<compile_context>
chip_gen: v7x
topology: tpu7x:2x2x1
jax: 0.10.0
libtpu: 0.0.40
codegen_flags: <defaults>
</compile_context>

<pallas_src>
import jax
import jax.numpy as jnp
from jax.experimental import pallas as pl
from jax.experimental.pallas import tpu as pltpu


def _round_up(x, m):
    return ((x + m - 1) // m) * m


# ----------------------------------------------------------------------------
# Fused kernel: message MLP + scatter-mean + aggregation MLP
# ----------------------------------------------------------------------------
def fused_node_layer_kernel(
        dest_ref, xe_ref,                      # per-edge-tile streams
        ng_ref, invc_ref,                      # per-node data (VMEM resident)
        w1m_ref, b1m_ref, w2m_ref, b2m_ref,    # message MLP
        w1ang_ref, w1am_ref, b1a_ref, w2a_ref, b2a_ref,  # aggregation MLP
        o_ref,                                 # (C, H2p) output
        agg_scr):                              # (C, Hp) f32 scatter accumulator
    e = pl.program_id(0)
    C = invc_ref.shape[0]
    tE = xe_ref.shape[0]

    # ---- init: zero the scatter accumulator -------------------------------
    @pl.when(e == 0)
    def _init():
        agg_scr[...] = jnp.zeros_like(agg_scr)

    # ---- message MLP for this edge tile (never leaves VMEM) ---------------
    h = jnp.dot(xe_ref[...], w1m_ref[...],
                preferred_element_type=jnp.float32)
    h = jnp.maximum(h + b1m_ref[...], 0.0)                    # f32 epilogue
    msg = jnp.dot(h.astype(jnp.bfloat16), w2m_ref[...],
                  preferred_element_type=jnp.float32)
    msg = jnp.maximum(msg + b2m_ref[...], 0.0)                # (tE, Hp) f32

    # ---- scatter-sum into the per-node accumulator (one-hot @ msg) --------
    dest = dest_ref[...]                                      # (1, tE) int32
    oh_dest = (jax.lax.broadcasted_iota(jnp.int32, (C, tE), 0) == dest
               ).astype(jnp.bfloat16)                         # (C, tE)
    agg_scr[...] += jnp.dot(oh_dest, msg.astype(jnp.bfloat16),
                            preferred_element_type=jnp.float32)

    # ---- finalize: mean normalization + aggregation MLP --------------------
    @pl.when(e == pl.num_programs(0) - 1)
    def _finalize():
        agg = (agg_scr[...] * invc_ref[...]).astype(jnp.bfloat16)
        h2 = jnp.dot(ng_ref[...], w1ang_ref[...],
                     preferred_element_type=jnp.float32)
        h2 = h2 + jnp.dot(agg, w1am_ref[...],
                          preferred_element_type=jnp.float32)
        h2 = jnp.maximum(h2 + b1a_ref[...], 0.0)
        o = jnp.dot(h2.astype(jnp.bfloat16), w2a_ref[...],
                    preferred_element_type=jnp.float32)
        o_ref[...] = jnp.maximum(o + b2a_ref[...], 0.0)


# ----------------------------------------------------------------------------
# Wrapper
# ----------------------------------------------------------------------------
def mlp_node_layer(node_feats, edge_index, edge_feats, glob_feats, batch,
                   params, *, tile_e=512):
    C, N_c = node_feats.shape
    E, N_e = edge_feats.shape
    N_g = glob_feats.shape[1]
    H = params["w2m"].shape[1]
    H2 = params["w2a"].shape[1]
    Hp = _round_up(H, 128)       # lane-dense message width
    H2p = _round_up(H2, 128)     # lane-dense output width

    src = edge_index[0].astype(jnp.int32)
    dest = edge_index[1].astype(jnp.int32)

    # --- mean normalization factors (per node), from real edges only --------
    counts = jax.ops.segment_sum(jnp.ones((E,), jnp.float32), dest,
                                 num_segments=C)
    inv_count = (1.0 / jnp.clip(counts, 1.0)).reshape(C, 1)

    # --- per-edge input: concat(node_feats[src], edge_feats) in bf16 --------
    xe = jnp.concatenate([node_feats[src], edge_feats], axis=1)
    xe = xe.astype(jnp.bfloat16)                              # (E, N_c+N_e)

    # --- pad the edge axis to a multiple of the tile size -------------------
    tE = min(tile_e, _round_up(E, 128))
    E_pad = _round_up(E, tE)
    pad = E_pad - E
    if pad:
        xe = jnp.pad(xe, ((0, pad), (0, 0)))
        # dest = C for padded edges -> one-hot row all-zero -> no contribution
        dest = jnp.concatenate([dest, jnp.full((pad,), C, jnp.int32)])
    dest2d = dest.reshape(1, E_pad)

    # --- per-node input for the aggregation MLP: concat(node, glob[batch]) --
    nodeglob = jnp.concatenate([node_feats, glob_feats[batch]], axis=1)
    nodeglob = nodeglob.astype(jnp.bfloat16)                  # (C, N_c+N_g)

    # --- weights: stack per-source blocks, pad out to lane-dense widths -----
    def padw(w, rows, cols):
        return jnp.pad(w, ((0, rows - w.shape[0]), (0, cols - w.shape[1])))

    K1 = N_c + N_e
    K2 = N_c + N_g
    w1m = jnp.concatenate([params["w1m_node"], params["w1m_edge"]], axis=0)
    w1m = padw(w1m, K1, Hp).astype(jnp.bfloat16)
    b1m = padw(params["b1m"], 1, Hp)
    w2m = padw(params["w2m"], Hp, Hp).astype(jnp.bfloat16)
    b2m = padw(params["b2m"], 1, Hp)
    w1ang = jnp.concatenate([params["w1a_node"], params["w1a_glob"]], axis=0)
    w1ang = padw(w1ang, K2, H2p).astype(jnp.bfloat16)
    w1am = padw(params["w1a_msg"], Hp, H2p).astype(jnp.bfloat16)
    b1a = padw(params["b1a"], 1, H2p)
    w2a = padw(params["w2a"], H2p, H2p).astype(jnp.bfloat16)
    b2a = padw(params["b2a"], 1, H2p)

    n_tiles = E_pad // tE

    row = lambda e: (e, 0)     # streams tiled over the edge axis
    col = lambda e: (0, e)
    const = lambda e: (0, 0)   # VMEM-resident across all grid steps

    grid_spec = pltpu.PrefetchScalarGridSpec(
        num_scalar_prefetch=0,
        grid=(n_tiles,),
        in_specs=[
            pl.BlockSpec((1, tE), col),        # dest
            pl.BlockSpec((tE, K1), row),       # concat(node[src], edge) bf16
            pl.BlockSpec((C, K2), const),      # concat(node, glob[batch]) bf16
            pl.BlockSpec((C, 1), const),       # 1/count
            pl.BlockSpec((K1, Hp), const),     # W1m (stacked)
            pl.BlockSpec((1, Hp), const),      # b1m
            pl.BlockSpec((Hp, Hp), const),     # W2m
            pl.BlockSpec((1, Hp), const),      # b2m
            pl.BlockSpec((K2, H2p), const),    # W1a (node ++ glob block)
            pl.BlockSpec((Hp, H2p), const),    # W1a (message block)
            pl.BlockSpec((1, H2p), const),     # b1a
            pl.BlockSpec((H2p, H2p), const),   # W2a
            pl.BlockSpec((1, H2p), const),     # b2a
        ],
        out_specs=pl.BlockSpec((C, H2p), const),
        scratch_shapes=[
            pltpu.VMEM((C, Hp), jnp.float32),  # scatter-sum accumulator
        ],
    )

    out = pl.pallas_call(
        fused_node_layer_kernel,
        out_shape=jax.ShapeDtypeStruct((C, H2p), jnp.float32),
        grid_spec=grid_spec,
        compiler_params=pltpu.CompilerParams(
            dimension_semantics=("arbitrary",),     # E is a reduction axis
            vmem_limit_bytes=32 * 1024 * 1024),
    )(dest2d, xe, nodeglob, inv_count,
      w1m, b1m, w2m, b2m, w1ang, w1am, b1a, w2a, b2a)

    return out[:, :H2]


# ----------------------------------------------------------------------------
# Pure-JAX f32 reference (module semantics)
# ----------------------------------------------------------------------------
def reference(node_feats, edge_index, edge_feats, glob_feats, batch, params):
    C = node_feats.shape[0]
    src, dest = edge_index[0], edge_index[1]
    w1m = jnp.concatenate([params["w1m_node"], params["w1m_edge"]], axis=0)
    x = jnp.concatenate([node_feats[src], edge_feats], axis=1)
    h = jnp.maximum(x @ w1m + params["b1m"], 0.0)
    msg = jnp.maximum(h @ params["w2m"] + params["b2m"], 0.0)
    summed = jax.ops.segment_sum(msg, dest, num_segments=C)
    cnt = jax.ops.segment_sum(jnp.ones((msg.shape[0], 1), jnp.float32), dest,
                              num_segments=C)
    agg = summed / jnp.clip(cnt, 1.0)
    w1a = jnp.concatenate([params["w1a_node"], params["w1a_msg"],
                           params["w1a_glob"]], axis=0)
    inp = jnp.concatenate([node_feats, agg, glob_feats[batch]], axis=1)
    h2 = jnp.maximum(inp @ w1a + params["b1a"], 0.0)
    return jnp.maximum(h2 @ params["w2a"] + params["b2a"], 0.0)


# ----------------------------------------------------------------------------
# Main
# ----------------------------------------------------------------------------
if __name__ == "__main__":
    # small graph: C nodes, E edges, B graphs in the batch
    C, E, B = 64, 1000, 2
    N_c, N_e, N_g = 8, 8, 4       # node / edge / global feature sizes
    H, H2 = 112, 96               # MLP widths (padded to 128 lanes in-kernel)

    key = jax.random.PRNGKey(0)
    ks = jax.random.split(key, 20)

    node_feats = jax.random.normal(ks[0], (C, N_c), jnp.float32)
    edge_feats = jax.random.normal(ks[1], (E, N_e), jnp.float32)
    glob_feats = jax.random.normal(ks[2], (B, N_g), jnp.float32)
    src = jax.random.randint(ks[3], (E,), 0, C)
    dest = jax.random.randint(ks[4], (E,), 0, C)
    edge_index = jnp.stack([src, dest]).astype(jnp.int32)
    batch = jnp.concatenate([jnp.zeros(C // 2, jnp.int32),
                             jnp.ones(C // 2, jnp.int32)])

    def init(k, shape, scale=0.1):
        return scale * jax.random.normal(k, shape, jnp.float32)

    params = {
        # message MLP: (N_c + N_e) -> H -> H, W1 split by input block
        "w1m_node": init(ks[5], (N_c, H)),
        "w1m_edge": init(ks[6], (N_e, H)),
        "b1m": init(ks[7], (1, H)),
        "w2m": init(ks[8], (H, H)),
        "b2m": init(ks[9], (1, H)),
        # aggregation MLP: (N_c + H + N_g) -> H2 -> H2, W1 split by input block
        "w1a_node": init(ks[10], (N_c, H2)),
        "w1a_msg": init(ks[11], (H, H2)),
        "w1a_glob": init(ks[12], (N_g, H2)),
        "b1a": init(ks[13], (1, H2)),
        "w2a": init(ks[14], (H2, H2)),
        "b2a": init(ks[15], (1, H2)),
    }

    out = mlp_node_layer(node_feats, edge_index, edge_feats, glob_feats,
                         batch, params, tile_e=512)
    out = jax.block_until_ready(out)

    ref = reference(node_feats, edge_index, edge_feats, glob_feats, batch,
                    params)
    assert out.shape == (C, H2)
    # bf16 MXU operands with f32 accumulation -> loosened tolerance
    assert jnp.allclose(out, ref, atol=2e-2, rtol=2e-2), "mismatch vs reference"

    print("KERNEL_OK")
</pallas_src>

<mosaic_0001>
module attributes {stable_mosaic.version = 11 : i64} {
  func.func @fused_node_layer_kernel(%arg0: i32, %arg1: memref<1x512xi32, #tpu.memory_space<vmem>>, %arg2: memref<512x16xbf16, #tpu.memory_space<vmem>>, %arg3: memref<64x12xbf16, #tpu.memory_space<vmem>>, %arg4: memref<64x1xf32, #tpu.memory_space<vmem>>, %arg5: memref<16x128xbf16, #tpu.memory_space<vmem>>, %arg6: memref<1x128xf32, #tpu.memory_space<vmem>>, %arg7: memref<128x128xbf16, #tpu.memory_space<vmem>>, %arg8: memref<1x128xf32, #tpu.memory_space<vmem>>, %arg9: memref<12x128xbf16, #tpu.memory_space<vmem>>, %arg10: memref<128x128xbf16, #tpu.memory_space<vmem>>, %arg11: memref<1x128xf32, #tpu.memory_space<vmem>>, %arg12: memref<128x128xbf16, #tpu.memory_space<vmem>>, %arg13: memref<1x128xf32, #tpu.memory_space<vmem>>, %arg14: memref<64x128xf32, #tpu.memory_space<vmem>>, %arg15: memref<64x128xf32, #tpu.memory_space<vmem>>) attributes {dimension_semantics = [#tpu.dimension_semantics<arbitrary>], iteration_bounds = array<i64: 2>, scalar_prefetch = 0 : i64, scratch_operands = 1 : i64, tpu.core_type = #tpu.core_type<tc>, window_params = [{transform_indices = @transform_0, window_bounds = array<i64: 1, 512>}, {transform_indices = @transform_1, window_bounds = array<i64: 512, 16>}, {pipeline_mode = #tpu.pipeline_mode<synchronous>, transform_indices = @transform_2, window_bounds = array<i64: 64, 12>}, {pipeline_mode = #tpu.pipeline_mode<synchronous>, transform_indices = @transform_3, window_bounds = array<i64: 64, 1>}, {pipeline_mode = #tpu.pipeline_mode<synchronous>, transform_indices = @transform_4, window_bounds = array<i64: 16, 128>}, {pipeline_mode = #tpu.pipeline_mode<synchronous>, transform_indices = @transform_5, window_bounds = array<i64: 1, 128>}, {pipeline_mode = #tpu.pipeline_mode<synchronous>, transform_indices = @transform_6, window_bounds = array<i64: 128, 128>}, {pipeline_mode = #tpu.pipeline_mode<synchronous>, transform_indices = @transform_7, window_bounds = array<i64: 1, 128>}, {pipeline_mode = #tpu.pipeline_mode<synchronous>, transform_indices = @transform_8, window_bounds = array<i64: 12, 128>}, {pipeline_mode = #tpu.pipeline_mode<synchronous>, transform_indices = @transform_9, window_bounds = array<i64: 128, 128>}, {pipeline_mode = #tpu.pipeline_mode<synchronous>, transform_indices = @transform_10, window_bounds = array<i64: 1, 128>}, {pipeline_mode = #tpu.pipeline_mode<synchronous>, transform_indices = @transform_11, window_bounds = array<i64: 128, 128>}, {pipeline_mode = #tpu.pipeline_mode<synchronous>, transform_indices = @transform_12, window_bounds = array<i64: 1, 128>}, {pipeline_mode = #tpu.pipeline_mode<synchronous>, transform_indices = @transform_13, window_bounds = array<i64: 64, 128>}]} {
    %c0_i32 = arith.constant 0 : i32
    %0 = arith.cmpi eq, %arg0, %c0_i32 : i32
    %1 = arith.extui %0 : i1 to i32
    %c0_i32_0 = arith.constant 0 : i32
    %2 = arith.cmpi ne, %1, %c0_i32_0 : i32
    scf.if %2 {
      %cst_21 = arith.constant 0.000000e+00 : f32
      %34 = vector.broadcast %cst_21 : f32 to vector<64x128xf32>
      %c0_22 = arith.constant 0 : index
      %c0_23 = arith.constant 0 : index
      %35 = vector.load %arg15[%c0_22, %c0_23] : memref<64x128xf32, #tpu.memory_space<vmem>>, vector<64x128xf32>
      tpu.vector_store %arg15[%c0_22, %c0_23], %34 {strides = array<i32>} : memref<64x128xf32, #tpu.memory_space<vmem>>, vector<64x128xf32>,
    } else {
    }
    %c0 = arith.constant 0 : index
    %c0_1 = arith.constant 0 : index
    %3 = vector.load %arg2[%c0, %c0_1] : memref<512x16xbf16, #tpu.memory_space<vmem>>, vector<512x16xbf16>
    %c0_2 = arith.constant 0 : index
    %c0_3 = arith.constant 0 : index
    %4 = vector.load %arg5[%c0_2, %c0_3] : memref<16x128xbf16, #tpu.memory_space<vmem>>, vector<16x128xbf16>
    %cst = arith.constant dense<0.000000e+00> : vector<512x128xf32>
    %5 = tpu.matmul %3, %4, %cst {dimension_numbers = #tpu.dot_dimension_numbers<[1], [0], [0], [1], [0, 0, 1, 1], [], []>} : vector<512x16xbf16>, vector<16x128xbf16>, vector<512x128xf32> -> vector<512x128xf32>
    %c0_4 = arith.constant 0 : index
    %c0_5 = arith.constant 0 : index
    %6 = vector.load %arg6[%c0_4, %c0_5] : memref<1x128xf32, #tpu.memory_space<vmem>>, vector<1x128xf32>
    %7 = vector.broadcast %6 : vector<1x128xf32> to vector<512x128xf32>
    %8 = arith.addf %5, %7 : vector<512x128xf32>
    %cst_6 = arith.constant 0.000000e+00 : f32
    %9 = vector.broadcast %cst_6 : f32 to vector<512x128xf32>
    %10 = arith.maximumf %8, %9 : vector<512x128xf32>
    %11 = arith.truncf %10 : vector<512x128xf32> to vector<512x128xbf16>
    %c0_7 = arith.constant 0 : index
    %c0_8 = arith.constant 0 : index
    %12 = vector.load %arg7[%c0_7, %c0_8] : memref<128x128xbf16, #tpu.memory_space<vmem>>, vector<128x128xbf16>
    %cst_9 = arith.constant dense<0.000000e+00> : vector<512x128xf32>
    %13 = tpu.matmul %11, %12, %cst_9 {dimension_numbers = #tpu.dot_dimension_numbers<[1], [0], [0], [1], [0, 0, 1, 1], [], []>} : vector<512x128xbf16>, vector<128x128xbf16>, vector<512x128xf32> -> vector<512x128xf32>
    %c0_10 = arith.constant 0 : index
    %c0_11 = arith.constant 0 : index
    %14 = vector.load %arg8[%c0_10, %c0_11] : memref<1x128xf32, #tpu.memory_space<vmem>>, vector<1x128xf32>
    %15 = vector.broadcast %14 : vector<1x128xf32> to vector<512x128xf32>
    %16 = arith.addf %13, %15 : vector<512x128xf32>
    %cst_12 = arith.constant 0.000000e+00 : f32
    %17 = vector.broadcast %cst_12 : f32 to vector<512x128xf32>
    %18 = arith.maximumf %16, %17 : vector<512x128xf32>
    %c0_13 = arith.constant 0 : index
    %c0_14 = arith.constant 0 : index
    %19 = vector.load %arg1[%c0_13, %c0_14] : memref<1x512xi32, #tpu.memory_space<vmem>>, vector<1x512xi32>
    %20 = tpu.iota {dimensions = array<i32: 0>} : vector<64x512xi32>
    %21 = vector.broadcast %19 : vector<1x512xi32> to vector<64x512xi32>
    %22 = arith.cmpi eq, %20, %21 : vector<64x512xi32>
    %23 = arith.extui %22 : vector<64x512xi1> to vector<64x512xi32>
    %24 = arith.sitofp %23 : vector<64x512xi32> to vector<64x512xf32>
    %25 = arith.truncf %24 : vector<64x512xf32> to vector<64x512xbf16>
    %c0_15 = arith.constant 0 : index
    %c0_16 = arith.constant 0 : index
    %26 = vector.load %arg15[%c0_15, %c0_16] : memref<64x128xf32, #tpu.memory_space<vmem>>, vector<64x128xf32>
    %27 = arith.truncf %18 : vector<512x128xf32> to vector<512x128xbf16>
    %cst_17 = arith.constant dense<0.000000e+00> : vector<64x128xf32>
    %28 = tpu.matmul %25, %27, %cst_17 {dimension_numbers = #tpu.dot_dimension_numbers<[1], [0], [0], [1], [0, 0, 1, 1], [], []>} : vector<64x512xbf16>, vector<512x128xbf16>, vector<64x128xf32> -> vector<64x128xf32>
    %29 = arith.addf %26, %28 : vector<64x128xf32>
    %c0_18 = arith.constant 0 : index
    %c0_19 = arith.constant 0 : index
    %30 = vector.load %arg15[%c0_18, %c0_19] : memref<64x128xf32, #tpu.memory_space<vmem>>, vector<64x128xf32>
    tpu.vector_store %arg15[%c0_18, %c0_19], %29 {strides = array<i32>} : memref<64x128xf32, #tpu.memory_space<vmem>>, vector<64x128xf32>,
    %c1_i32 = arith.constant 1 : i32
    %31 = arith.cmpi eq, %arg0, %c1_i32 : i32
    %32 = arith.extui %31 : i1 to i32
    %c0_i32_20 = arith.constant 0 : i32
    %33 = arith.cmpi ne, %32, %c0_i32_20 : i32
    scf.if %33 {
      %c0_21 = arith.constant 0 : index
      %c0_22 = arith.constant 0 : index
      %34 = vector.load %arg15[%c0_21, %c0_22] : memref<64x128xf32, #tpu.memory_space<vmem>>, vector<64x128xf32>
      %c0_23 = arith.constant 0 : index
      %c0_24 = arith.constant 0 : index
      %35 = vector.load %arg4[%c0_23, %c0_24] : memref<64x1xf32, #tpu.memory_space<vmem>>, vector<64x1xf32>
      %36 = vector.broadcast %35 : vector<64x1xf32> to vector<64x128xf32>
      %37 = arith.mulf %34, %36 : vector<64x128xf32>
      %38 = arith.truncf %37 : vector<64x128xf32> to vector<64x128xbf16>
      %c0_25 = arith.constant 0 : index
      %c0_26 = arith.constant 0 : index
      %39 = vector.load %arg3[%c0_25, %c0_26] : memref<64x12xbf16, #tpu.memory_space<vmem>>, vector<64x12xbf16>
      %c0_27 = arith.constant 0 : index
      %c0_28 = arith.constant 0 : index
      %40 = vector.load %arg9[%c0_27, %c0_28] : memref<12x128xbf16, #tpu.memory_space<vmem>>, vector<12x128xbf16>
      %cst_29 = arith.constant dense<0.000000e+00> : vector<64x128xf32>
      %41 = tpu.matmul %39, %40, %cst_29 {dimension_numbers = #tpu.dot_dimension_numbers<[1], [0], [0], [1], [0, 0, 1, 1], [], []>} : vector<64x12xbf16>, vector<12x128xbf16>, vector<64x128xf32> -> vector<64x128xf32>
      %c0_30 = arith.constant 0 : index
      %c0_31 = arith.constant 0 : index
      %42 = vector.load %arg10[%c0_30, %c0_31] : memref<128x128xbf16, #tpu.memory_space<vmem>>, vector<128x128xbf16>
      %cst_32 = arith.constant dense<0.000000e+00> : vector<64x128xf32>
      %43 = tpu.matmul %38, %42, %cst_32 {dimension_numbers = #tpu.dot_dimension_numbers<[1], [0], [0], [1], [0, 0, 1, 1], [], []>} : vector<64x128xbf16>, vector<128x128xbf16>, vector<64x128xf32> -> vector<64x128xf32>
      %44 = arith.addf %41, %43 : vector<64x128xf32>
      %c0_33 = arith.constant 0 : index
      %c0_34 = arith.constant 0 : index
      %45 = vector.load %arg11[%c0_33, %c0_34] : memref<1x128xf32, #tpu.memory_space<vmem>>, vector<1x128xf32>
      %46 = vector.broadcast %45 : vector<1x128xf32> to vector<64x128xf32>
      %47 = arith.addf %44, %46 : vector<64x128xf32>
      %cst_35 = arith.constant 0.000000e+00 : f32
      %48 = vector.broadcast %cst_35 : f32 to vector<64x128xf32>
      %49 = arith.maximumf %47, %48 : vector<64x128xf32>
      %50 = arith.truncf %49 : vector<64x128xf32> to vector<64x128xbf16>
      %c0_36 = arith.constant 0 : index
      %c0_37 = arith.constant 0 : index
      %51 = vector.load %arg12[%c0_36, %c0_37] : memref<128x128xbf16, #tpu.memory_space<vmem>>, vector<128x128xbf16>
      %cst_38 = arith.constant dense<0.000000e+00> : vector<64x128xf32>
      %52 = tpu.matmul %50, %51, %cst_38 {dimension_numbers = #tpu.dot_dimension_numbers<[1], [0], [0], [1], [0, 0, 1, 1], [], []>} : vector<64x128xbf16>, vector<128x128xbf16>, vector<64x128xf32> -> vector<64x128xf32>
      %c0_39 = arith.constant 0 : index
      %c0_40 = arith.constant 0 : index
      %53 = vector.load %arg13[%c0_39, %c0_40] : memref<1x128xf32, #tpu.memory_space<vmem>>, vector<1x128xf32>
      %54 = vector.broadcast %53 : vector<1x128xf32> to vector<64x128xf32>
      %55 = arith.addf %52, %54 : vector<64x128xf32>
      %cst_41 = arith.constant 0.000000e+00 : f32
      %56 = vector.broadcast %cst_41 : f32 to vector<64x128xf32>
      %57 = arith.maximumf %55, %56 : vector<64x128xf32>
      %c0_42 = arith.constant 0 : index
      %c0_43 = arith.constant 0 : index
      %58 = vector.load %arg14[%c0_42, %c0_43] : memref<64x128xf32, #tpu.memory_space<vmem>>, vector<64x128xf32>
      tpu.vector_store %arg14[%c0_42, %c0_43], %57 {strides = array<i32>} : memref<64x128xf32, #tpu.memory_space<vmem>>, vector<64x128xf32>,
    } else {
    }
    return
  }
  func.func @transform_0(%arg0: i32) -> (i32, i32) {
    %c0_i32 = arith.constant 0 : i32
    %c0_i32_0 = arith.constant 0 : i32
    return %c0_i32, %arg0 : i32, i32
  }
  func.func @transform_1(%arg0: i32) -> (i32, i32) {
    %c0_i32 = arith.constant 0 : i32
    %c0_i32_0 = arith.constant 0 : i32
    return %arg0, %c0_i32 : i32, i32
  }
  func.func @transform_2(%arg0: i32) -> (i32, i32) {
    %c0_i32 = arith.constant 0 : i32
    %c0_i32_0 = arith.constant 0 : i32
    %c0_i32_1 = arith.constant 0 : i32
    return %c0_i32, %c0_i32_0 : i32, i32
  }
  func.func @transform_3(%arg0: i32) -> (i32, i32) {
    %c0_i32 = arith.constant 0 : i32
    %c0_i32_0 = arith.constant 0 : i32
    %c0_i32_1 = arith.constant 0 : i32
    return %c0_i32, %c0_i32_0 : i32, i32
  }
  func.func @transform_4(%arg0: i32) -> (i32, i32) {
    %c0_i32 = arith.constant 0 : i32
    %c0_i32_0 = arith.constant 0 : i32
    %c0_i32_1 = arith.constant 0 : i32
    return %c0_i32, %c0_i32_0 : i32, i32
  }
  func.func @transform_5(%arg0: i32) -> (i32, i32) {
    %c0_i32 = arith.constant 0 : i32
    %c0_i32_0 = arith.constant 0 : i32
    %c0_i32_1 = arith.constant 0 : i32
    return %c0_i32, %c0_i32_0 : i32, i32
  }
  func.func @transform_6(%arg0: i32) -> (i32, i32) {
    %c0_i32 = arith.constant 0 : i32
    %c0_i32_0 = arith.constant 0 : i32
    %c0_i32_1 = arith.constant 0 : i32
    return %c0_i32, %c0_i32_0 : i32, i32
  }
  func.func @transform_7(%arg0: i32) -> (i32, i32) {
    %c0_i32 = arith.constant 0 : i32
    %c0_i32_0 = arith.constant 0 : i32
    %c0_i32_1 = arith.constant 0 : i32
    return %c0_i32, %c0_i32_0 : i32, i32
  }
  func.func @transform_8(%arg0: i32) -> (i32, i32) {
    %c0_i32 = arith.constant 0 : i32
    %c0_i32_0 = arith.constant 0 : i32
    %c0_i32_1 = arith.constant 0 : i32
    return %c0_i32, %c0_i32_0 : i32, i32
  }
  func.func @transform_9(%arg0: i32) -> (i32, i32) {
    %c0_i32 = arith.constant 0 : i32
    %c0_i32_0 = arith.constant 0 : i32
    %c0_i32_1 = arith.constant 0 : i32
    return %c0_i32, %c0_i32_0 : i32, i32
  }
  func.func @transform_10(%arg0: i32) -> (i32, i32) {
    %c0_i32 = arith.constant 0 : i32
    %c0_i32_0 = arith.constant 0 : i32
    %c0_i32_1 = arith.constant 0 : i32
    return %c0_i32, %c0_i32_0 : i32, i32
  }
  func.func @transform_11(%arg0: i32) -> (i32, i32) {
    %c0_i32 = arith.constant 0 : i32
    %c0_i32_0 = arith.constant 0 : i32
    %c0_i32_1 = arith.constant 0 : i32
    return %c0_i32, %c0_i32_0 : i32, i32
  }
  func.func @transform_12(%arg0: i32) -> (i32, i32) {
    %c0_i32 = arith.constant 0 : i32
    %c0_i32_0 = arith.constant 0 : i32
    %c0_i32_1 = arith.constant 0 : i32
    return %c0_i32, %c0_i32_0 : i32, i32
  }
  func.func @transform_13(%arg0: i32) -> (i32, i32) {
    %c0_i32 = arith.constant 0 : i32
    %c0_i32_0 = arith.constant 0 : i32
    %c0_i32_1 = arith.constant 0 : i32
    return %c0_i32, %c0_i32_0 : i32, i32
  }
}

</mosaic_0001>

<llo_original>
// kernel: tpu_custom_call.1
$region0: #{tpu_custom_call.1}
  #allocation0 [shape = 'u32[]', space=smem, size = 0x4, offset = 0x4, fixed_abs, tag = 'smem constant byte address 0x4 - core index']
  #allocation1 [shape = 'u32[144,128]{1,0:T(1,128)}', space=vmem, size = 0x12000, scoped, tag = 'internal scratch']
  #allocation2 [shape = 'f32[64,128]{1,0:T(8,128)}', space=vmem, size = 0x8000, scoped, tag = 'scratch operand']
  %s0 = inlined_call_operand.vmem [shape: s32[1,1024], index: 0, kind: input, shape index: {}]
  %s1 = inlined_call_operand.vmem [shape: bf16[1024,16], index: 1, kind: input, shape index: {}]
  %s2 = inlined_call_operand.vmem [shape: bf16[64,12], index: 2, kind: input, shape index: {}]
  %s3 = inlined_call_operand.vmem [shape: f32[64,1], index: 3, kind: input, shape index: {}]
  %s4 = inlined_call_operand.vmem [shape: bf16[16,128], index: 4, kind: input, shape index: {}]
  %s5 = inlined_call_operand.vmem [shape: f32[1,128], index: 5, kind: input, shape index: {}]
  %s6 = inlined_call_operand.vmem [shape: bf16[128,128], index: 6, kind: input, shape index: {}]
  %s7 = inlined_call_operand.vmem [shape: f32[1,128], index: 7, kind: input, shape index: {}]
  %s8 = inlined_call_operand.vmem [shape: bf16[12,128], index: 8, kind: input, shape index: {}]
  %s9 = inlined_call_operand.vmem [shape: bf16[128,128], index: 9, kind: input, shape index: {}]
  %s10 = inlined_call_operand.vmem [shape: f32[1,128], index: 10, kind: input, shape index: {}]
  %s11 = inlined_call_operand.vmem [shape: bf16[128,128], index: 11, kind: input, shape index: {}]
  %s12 = inlined_call_operand.vmem [shape: f32[1,128], index: 12, kind: input, shape index: {}]
  %s13 = inlined_call_operand.hbm [shape: f32[64,128], index: 13, kind: output, shape index: {}]
  %s14 = sld [smem:[#allocation0]]
  $region93: #{tpu_custom_call.1} parent=0
    _
  %s16 = ssub.s32 1, %s14
  %s17 = scalar_select 0, %s16, %s14
  $region1: #{tpu_custom_call.1} parent=0
    #allocation3 [shape = 'u8[32768]{0}', space=vmem, size = 0x8000, scoped, tag = 'output window, operand 0, single buffered']
    #allocation4 [shape = 's32[2]{0}', space=sflag, size = 0x8, scoped, tag = 'scoped memory for tpu_custom_call.1']
    %18 = vsyncpa [#allocation4], 0
    loop: start=0, step=1, limit=4
    $region2: #{tpu_custom_call.1} parent=1 // loop_pre_header
      _
    $region3: #{tpu_custom_call.1} parent=1 // loop_header
      %s20 = sphi 0, %s24
      %p21 = scmp.ge.s32.totalorder %s20, 4
      %s30 = sphi 0, %s32
      %s33 = sphi 0, %s30
      %s34 = sphi 0, %s33
      %s50 = sphi 0, %s34
      %s56 = sphi 0, %s58
      %s59 = sphi 0, %s56
      %s60 = sphi 0, %s59
      %s76 = sphi 0, %s60
      %s80 = sphi 0, %s80
      %s82 = sphi 0, %s80
      %s83 = sphi 0, %s82
      %s97 = sphi 0, %s83
      %s101 = sphi 0, %s101
      %s103 = sphi 0, %s101
      %s104 = sphi 0, %s103
      %s118 = sphi 0, %s104
      %s122 = sphi 0, %s122
      %s124 = sphi 0, %s122
      %s125 = sphi 0, %s124
      %s139 = sphi 0, %s125
      %s143 = sphi 0, %s143
      %s145 = sphi 0, %s143
      %s146 = sphi 0, %s145
      %s160 = sphi 0, %s146
      %s164 = sphi 0, %s164
      %s166 = sphi 0, %s164
      %s167 = sphi 0, %s166
      %s181 = sphi 0, %s167
      %s185 = sphi 0, %s185
      %s187 = sphi 0, %s185
      %s188 = sphi 0, %s187
      %s202 = sphi 0, %s188
      %s206 = sphi 0, %s206
      %s208 = sphi 0, %s206
      %s209 = sphi 0, %s208
      %s223 = sphi 0, %s209
      %s227 = sphi 0, %s227
      %s229 = sphi 0, %s227
      %s230 = sphi 0, %s229
      %s244 = sphi 0, %s230
      %s248 = sphi 0, %s248
      %s250 = sphi 0, %s248
      %s251 = sphi 0, %s250
      %s265 = sphi 0, %s251
      %s269 = sphi 0, %s269
      %s271 = sphi 0, %s269
      %s272 = sphi 0, %s271
      %s286 = sphi 0, %s272
      %s290 = sphi 0, %s290
      %s292 = sphi 0, %s290
      %s293 = sphi 0, %s292
      %s307 = sphi 0, %s293
      %s311 = sphi 0, %s311
      %s313 = sphi 0, %s311
      %s314 = sphi 0, %s313
      %s328 = sphi 0, %s314
    $region4: #{tpu_custom_call.1} parent=1 // loop_header_branch
      %23 = sbr.rel (%p21) target = $region8
    $region5: #{tpu_custom_call.1} parent=1 // loop_body
      %s25 = ssub.s32 %s20, 1
      %s26 = ssub.s32 %s20, 2
      %s27 = sadd.s32 %s20, 1
      %s28 = ssub.s32 %s20, %s27
      %p29 = scmp.eq.s32.totalorder %s28, 0
      %s31 = sadd.s32 %s30, 1
      %s32 = scalar_select %p29, %s30, %s31
      %p35 = pneg %p29
      %p36 = scmp.eq.s32.totalorder %s20, 1
      %p37 = por %p35, %p36
      %p38 = scmp.ne.s32.totalorder %s30, %s33
      %p39 = scmp.eq.s32.totalorder %s20, 0
      %p40 = por %p38, %p39
      %p41 = scmp.ne.s32.totalorder %s30, %s33
      %p42 = scmp.eq.s32.totalorder %s25, 1
      %p43 = por %p41, %p42
      %p44 = scmp.ne.s32.totalorder %s33, %s34
      %p45 = scmp.eq.s32.totalorder %s25, 0
      %p46 = por %p44, %p45
      %p47 = scmp.ne.s32.totalorder %s33, %s34
      %p48 = scmp.eq.s32.totalorder %s26, 1
      %p49 = por %p47, %p48
      %p51 = scmp.ne.s32.totalorder %s34, %s50
      %p52 = scmp.eq.s32.totalorder %s26, 0
      %p53 = por %p51, %p52
      %s54 = ssub.s32 %s20, %s27
      %p55 = scmp.eq.s32.totalorder %s54, 0
      %s57 = sadd.s32 %s56, 1
      %s58 = scalar_select %p55, %s56, %s57
      %p61 = pneg %p55
      %p62 = scmp.eq.s32.totalorder %s20, 1
      %p63 = por %p61, %p62
      %p64 = scmp.ne.s32.totalorder %s56, %s59
      %p65 = scmp.eq.s32.totalorder %s20, 0
      %p66 = por %p64, %p65
      %p67 = scmp.ne.s32.totalorder %s56, %s59
      %p68 = scmp.eq.s32.totalorder %s25, 1
      %p69 = por %p67, %p68
      %p70 = scmp.ne.s32.totalorder %s59, %s60
      %p71 = scmp.eq.s32.totalorder %s25, 0
      %p72 = por %p70, %p71
      %p73 = scmp.ne.s32.totalorder %s59, %s60
      %p74 = scmp.eq.s32.totalorder %s26, 1
      %p75 = por %p73, %p74
      %p77 = scmp.ne.s32.totalorder %s60, %s76
      %p78 = scmp.eq.s32.totalorder %s26, 0
      %p79 = por %p77, %p78
      %s81 = sadd.s32 %s80, 1
      %p84 = scmp.eq.s32.totalorder %s20, 1
      %p85 = scmp.ne.s32.totalorder %s80, %s82
      %p86 = scmp.eq.s32.totalorder %s20, 0
      %p87 = por %p85, %p86
      %p88 = scmp.ne.s32.totalorder %s80, %s82
      %p89 = scmp.eq.s32.totalorder %s25, 1
      %p90 = por %p88, %p89
      %p91 = scmp.ne.s32.totalorder %s82, %s83
      %p92 = scmp.eq.s32.totalorder %s25, 0
      %p93 = por %p91, %p92
      %p94 = scmp.ne.s32.totalorder %s82, %s83
      %p95 = scmp.eq.s32.totalorder %s26, 1
      %p96 = por %p94, %p95
      %p98 = scmp.ne.s32.totalorder %s83, %s97
      %p99 = scmp.eq.s32.totalorder %s26, 0
      %p100 = por %p98, %p99
      %s102 = sadd.s32 %s101, 1
      %p105 = scmp.eq.s32.totalorder %s20, 1
      %p106 = scmp.ne.s32.totalorder %s101, %s103
      %p107 = scmp.eq.s32.totalorder %s20, 0
      %p108 = por %p106, %p107
      %p109 = scmp.ne.s32.totalorder %s101, %s103
      %p110 = scmp.eq.s32.totalorder %s25, 1
      %p111 = por %p109, %p110
      %p112 = scmp.ne.s32.totalorder %s103, %s104
      %p113 = scmp.eq.s32.totalorder %s25, 0
      %p114 = por %p112, %p113
      %p115 = scmp.ne.s32.totalorder %s103, %s104
      %p116 = scmp.eq.s32.totalorder %s26, 1
      %p117 = por %p115, %p116
      %p119 = scmp.ne.s32.totalorder %s104, %s118
      %p120 = scmp.eq.s32.totalorder %s26, 0
      %p121 = por %p119, %p120
      %s123 = sadd.s32 %s122, 1
      %p126 = scmp.eq.s32.totalorder %s20, 1
      %p127 = scmp.ne.s32.totalorder %s122, %s124
      %p128 = scmp.eq.s32.totalorder %s20, 0
      %p129 = por %p127, %p128
      %p130 = scmp.ne.s32.totalorder %s122, %s124
      %p131 = scmp.eq.s32.totalorder %s25, 1
      %p132 = por %p130, %p131
      %p133 = scmp.ne.s32.totalorder %s124, %s125
      %p134 = scmp.eq.s32.totalorder %s25, 0
      %p135 = por %p133, %p134
      %p136 = scmp.ne.s32.totalorder %s124, %s125
      %p137 = scmp.eq.s32.totalorder %s26, 1
      %p138 = por %p136, %p137
      %p140 = scmp.ne.s32.totalorder %s125, %s139
      %p141 = scmp.eq.s32.totalorder %s26, 0
      %p142 = por %p140, %p141
      %s144 = sadd.s32 %s143, 1
      %p147 = scmp.eq.s32.totalorder %s20, 1
      %p148 = scmp.ne.s32.totalorder %s143, %s145
      %p149 = scmp.eq.s32.totalorder %s20, 0
      %p150 = por %p148, %p149
      %p151 = scmp.ne.s32.totalorder %s143, %s145
      %p152 = scmp.eq.s32.totalorder %s25, 1
      %p153 = por %p151, %p152
      %p154 = scmp.ne.s32.totalorder %s145, %s146
      %p155 = scmp.eq.s32.totalorder %s25, 0
      %p156 = por %p154, %p155
      %p157 = scmp.ne.s32.totalorder %s145, %s146
      %p158 = scmp.eq.s32.totalorder %s26, 1
      %p159 = por %p157, %p158
      %p161 = scmp.ne.s32.totalorder %s146, %s160
      %p162 = scmp.eq.s32.totalorder %s26, 0
      %p163 = por %p161, %p162
      %s165 = sadd.s32 %s164, 1
      %p168 = scmp.eq.s32.totalorder %s20, 1
      %p169 = scmp.ne.s32.totalorder %s164, %s166
      %p170 = scmp.eq.s32.totalorder %s20, 0
      %p171 = por %p169, %p170
      %p172 = scmp.ne.s32.totalorder %s164, %s166
      %p173 = scmp.eq.s32.totalorder %s25, 1
      %p174 = por %p172, %p173
      %p175 = scmp.ne.s32.totalorder %s166, %s167
      %p176 = scmp.eq.s32.totalorder %s25, 0
      %p177 = por %p175, %p176
      %p178 = scmp.ne.s32.totalorder %s166, %s167
      %p179 = scmp.eq.s32.totalorder %s26, 1
      %p180 = por %p178, %p179
      %p182 = scmp.ne.s32.totalorder %s167, %s181
      %p183 = scmp.eq.s32.totalorder %s26, 0
      %p184 = por %p182, %p183
      %s186 = sadd.s32 %s185, 1
      %p189 = scmp.eq.s32.totalorder %s20, 1
      %p190 = scmp.ne.s32.totalorder %s185, %s187
      %p191 = scmp.eq.s32.totalorder %s20, 0
      %p192 = por %p190, %p191
      %p193 = scmp.ne.s32.totalorder %s185, %s187
      %p194 = scmp.eq.s32.totalorder %s25, 1
      %p195 = por %p193, %p194
      %p196 = scmp.ne.s32.totalorder %s187, %s188
      %p197 = scmp.eq.s32.totalorder %s25, 0
      %p198 = por %p196, %p197
      %p199 = scmp.ne.s32.totalorder %s187, %s188
      %p200 = scmp.eq.s32.totalorder %s26, 1
      %p201 = por %p199, %p200
      %p203 = scmp.ne.s32.totalorder %s188, %s202
      %p204 = scmp.eq.s32.totalorder %s26, 0
      %p205 = por %p203, %p204
      %s207 = sadd.s32 %s206, 1
      %p210 = scmp.eq.s32.totalorder %s20, 1
      %p211 = scmp.ne.s32.totalorder %s206, %s208
      %p212 = scmp.eq.s32.totalorder %s20, 0
      %p213 = por %p211, %p212
      %p214 = scmp.ne.s32.totalorder %s206, %s208
      %p215 = scmp.eq.s32.totalorder %s25, 1
      %p216 = por %p214, %p215
      %p217 = scmp.ne.s32.totalorder %s208, %s209
      %p218 = scmp.eq.s32.totalorder %s25, 0
      %p219 = por %p217, %p218
      %p220 = scmp.ne.s32.totalorder %s208, %s209
      %p221 = scmp.eq.s32.totalorder %s26, 1
      %p222 = por %p220, %p221
      %p224 = scmp.ne.s32.totalorder %s209, %s223
      %p225 = scmp.eq.s32.totalorder %s26, 0
      %p226 = por %p224, %p225
      %s228 = sadd.s32 %s227, 1
      %p231 = scmp.eq.s32.totalorder %s20, 1
      %p232 = scmp.ne.s32.totalorder %s227, %s229
      %p233 = scmp.eq.s32.totalorder %s20, 0
      %p234 = por %p232, %p233
      %p235 = scmp.ne.s32.totalorder %s227, %s229
      %p236 = scmp.eq.s32.totalorder %s25, 1
      %p237 = por %p235, %p236
      %p238 = scmp.ne.s32.totalorder %s229, %s230
      %p239 = scmp.eq.s32.totalorder %s25, 0
      %p240 = por %p238, %p239
      %p241 = scmp.ne.s32.totalorder %s229, %s230
      %p242 = scmp.eq.s32.totalorder %s26, 1
      %p243 = por %p241, %p242
      %p245 = scmp.ne.s32.totalorder %s230, %s244
      %p246 = scmp.eq.s32.totalorder %s26, 0
      %p247 = por %p245, %p246
      %s249 = sadd.s32 %s248, 1
      %p252 = scmp.eq.s32.totalorder %s20, 1
      %p253 = scmp.ne.s32.totalorder %s248, %s250
      %p254 = scmp.eq.s32.totalorder %s20, 0
      %p255 = por %p253, %p254
      %p256 = scmp.ne.s32.totalorder %s248, %s250
      %p257 = scmp.eq.s32.totalorder %s25, 1
      %p258 = por %p256, %p257
      %p259 = scmp.ne.s32.totalorder %s250, %s251
      %p260 = scmp.eq.s32.totalorder %s25, 0
      %p261 = por %p259, %p260
      %p262 = scmp.ne.s32.totalorder %s250, %s251
      %p263 = scmp.eq.s32.totalorder %s26, 1
      %p264 = por %p262, %p263
      %p266 = scmp.ne.s32.totalorder %s251, %s265
      %p267 = scmp.eq.s32.totalorder %s26, 0
      %p268 = por %p266, %p267
      %s270 = sadd.s32 %s269, 1
      %p273 = scmp.eq.s32.totalorder %s20, 1
      %p274 = scmp.ne.s32.totalorder %s269, %s271
      %p275 = scmp.eq.s32.totalorder %s20, 0
      %p276 = por %p274, %p275
      %p277 = scmp.ne.s32.totalorder %s269, %s271
      %p278 = scmp.eq.s32.totalorder %s25, 1
      %p279 = por %p277, %p278
      %p280 = scmp.ne.s32.totalorder %s271, %s272
      %p281 = scmp.eq.s32.totalorder %s25, 0
      %p282 = por %p280, %p281
      %p283 = scmp.ne.s32.totalorder %s271, %s272
      %p284 = scmp.eq.s32.totalorder %s26, 1
      %p285 = por %p283, %p284
      %p287 = scmp.ne.s32.totalorder %s272, %s286
      %p288 = scmp.eq.s32.totalorder %s26, 0
      %p289 = por %p287, %p288
      %s291 = sadd.s32 %s290, 1
      %p294 = scmp.eq.s32.totalorder %s20, 1
      %p295 = scmp.ne.s32.totalorder %s290, %s292
      %p296 = scmp.eq.s32.totalorder %s20, 0
      %p297 = por %p295, %p296
      %p298 = scmp.ne.s32.totalorder %s290, %s292
      %p299 = scmp.eq.s32.totalorder %s25, 1
      %p300 = por %p298, %p299
      %p301 = scmp.ne.s32.totalorder %s292, %s293
      %p302 = scmp.eq.s32.totalorder %s25, 0
      %p303 = por %p301, %p302
      %p304 = scmp.ne.s32.totalorder %s292, %s293
      %p305 = scmp.eq.s32.totalorder %s26, 1
      %p306 = por %p304, %p305
      %p308 = scmp.ne.s32.totalorder %s293, %s307
      %p309 = scmp.eq.s32.totalorder %s26, 0
      %p310 = por %p308, %p309
      %s312 = sadd.s32 %s311, 1
      %p315 = scmp.eq.s32.totalorder %s20, 1
      %p316 = scmp.ne.s32.totalorder %s311, %s313
      %p317 = scmp.eq.s32.totalorder %s20, 0
      %p318 = por %p316, %p317
      %p319 = scmp.ne.s32.totalorder %s311, %s313
      %p320 = scmp.eq.s32.totalorder %s25, 1
      %p321 = por %p319, %p320
      %p322 = scmp.ne.s32.totalorder %s313, %s314
      %p323 = scmp.eq.s32.totalorder %s25, 0
      %p324 = por %p322, %p323
      %p325 = scmp.ne.s32.totalorder %s313, %s314
      %p326 = scmp.eq.s32.totalorder %s26, 1
      %p327 = por %p325, %p326
      %p329 = scmp.ne.s32.totalorder %s314, %s328
      %p330 = scmp.eq.s32.totalorder %s26, 0
      %p331 = por %p329, %p330
      %p332 = scmp.le.s32.totalorder 1, %s20
      %p333 = scmp.lt.s32.totalorder %s20, 3
      %p334 = pnand %p332, %p333
      %p335 = pneg %p334
      // Predicated region
      $region9: #{tpu_custom_call.1} parent=5 // pred_check
        _
      $region10: #{tpu_custom_call.1} parent=5 // pred_check_branch
        %337 = sbr.rel (%p334) target = $region12
      $region11: #{tpu_custom_call.1} parent=5 // pred_region
        %s338 = ssub.s32 %s20, 1
        // Predicated region
        $region13: #{tpu_custom_call.1} parent=11 // pred_check
          %p339 = pneg %p93
        $region14: #{tpu_custom_call.1} parent=11 // pred_check_branch
          %341 = sbr.rel (%p339) target = $region16
        $region15: #{tpu_custom_call.1} parent=11 // pred_region
          _
        $region16: #{tpu_custom_call.1} parent=11 // pred_fallthru
          _
        // Predicated region
        $region17: #{tpu_custom_call.1} parent=11 // pred_check
          %p342 = pneg %p114
        $region18: #{tpu_custom_call.1} parent=11 // pred_check_branch
          %344 = sbr.rel (%p342) target = $region20
        $region19: #{tpu_custom_call.1} parent=11 // pred_region
          _
        $region20: #{tpu_custom_call.1} parent=11 // pred_fallthru
          _
        // Predicated region
        $region21: #{tpu_custom_call.1} parent=11 // pred_check
          %p345 = pneg %p135
        $region22: #{tpu_custom_call.1} parent=11 // pred_check_branch
          %347 = sbr.rel (%p345) target = $region24
        $region23: #{tpu_custom_call.1} parent=11 // pred_region
          _
        $region24: #{tpu_custom_call.1} parent=11 // pred_fallthru
          _
        // Predicated region
        $region25: #{tpu_custom_call.1} parent=11 // pred_check
          %p348 = pneg %p156
        $region26: #{tpu_custom_call.1} parent=11 // pred_check_branch
          %350 = sbr.rel (%p348) target = $region28
        $region27: #{tpu_custom_call.1} parent=11 // pred_region
          _
        $region28: #{tpu_custom_call.1} parent=11 // pred_fallthru
          _
        // Predicated region
        $region29: #{tpu_custom_call.1} parent=11 // pred_check
          %p351 = pneg %p177
        $region30: #{tpu_custom_call.1} parent=11 // pred_check_branch
          %353 = sbr.rel (%p351) target = $region32
        $region31: #{tpu_custom_call.1} parent=11 // pred_region
          _
        $region32: #{tpu_custom_call.1} parent=11 // pred_fallthru
          _
        // Predicated region
        $region33: #{tpu_custom_call.1} parent=11 // pred_check
          %p354 = pneg %p198
        $region34: #{tpu_custom_call.1} parent=11 // pred_check_branch
          %356 = sbr.rel (%p354) target = $region36
        $region35: #{tpu_custom_call.1} parent=11 // pred_region
          _
        $region36: #{tpu_custom_call.1} parent=11 // pred_fallthru
          _
        // Predicated region
        $region37: #{tpu_custom_call.1} parent=11 // pred_check
          %p357 = pneg %p219
        $region38: #{tpu_custom_call.1} parent=11 // pred_check_branch
          %359 = sbr.rel (%p357) target = $region40
        $region39: #{tpu_custom_call.1} parent=11 // pred_region
          _
        $region40: #{tpu_custom_call.1} parent=11 // pred_fallthru
          _
        // Predicated region
        $region41: #{tpu_custom_call.1} parent=11 // pred_check
          %p360 = pneg %p240
        $region42: #{tpu_custom_call.1} parent=11 // pred_check_branch
          %362 = sbr.rel (%p360) target = $region44
        $region43: #{tpu_custom_call.1} parent=11 // pred_region
          _
        $region44: #{tpu_custom_call.1} parent=11 // pred_fallthru
          _
        // Predicated region
        $region45: #{tpu_custom_call.1} parent=11 // pred_check
          %p363 = pneg %p261
        $region46: #{tpu_custom_call.1} parent=11 // pred_check_branch
          %365 = sbr.rel (%p363) target = $region48
        $region47: #{tpu_custom_call.1} parent=11 // pred_region
          _
        $region48: #{tpu_custom_call.1} parent=11 // pred_fallthru
          _
        // Predicated region
        $region49: #{tpu_custom_call.1} parent=11 // pred_check
          %p366 = pneg %p282
        $region50: #{tpu_custom_call.1} parent=11 // pred_check_branch
          %368 = sbr.rel (%p366) target = $region52
        $region51: #{tpu_custom_call.1} parent=11 // pred_region
          _
        $region52: #{tpu_custom_call.1} parent=11 // pred_fallthru
          _
        // Predicated region
        $region53: #{tpu_custom_call.1} parent=11 // pred_check
          %p369 = pneg %p303
        $region54: #{tpu_custom_call.1} parent=11 // pred_check_branch
          %371 = sbr.rel (%p369) target = $region56
        $region55: #{tpu_custom_call.1} parent=11 // pred_region
          _
        $region56: #{tpu_custom_call.1} parent=11 // pred_fallthru
          _
      $region12: #{tpu_custom_call.1} parent=5 // pred_fallthru
        _
      %p372 = scmp.lt.s32.totalorder %s20, 2
      // Predicated region
      $region57: #{tpu_custom_call.1} parent=5 // pred_check
        %p373 = pneg %p372
      $region58: #{tpu_custom_call.1} parent=5 // pred_check_branch
        %375 = sbr.rel (%p373) target = $region60
      $region59: #{tpu_custom_call.1} parent=5 // pred_region
        // Predicated region
        $region61: #{tpu_custom_call.1} parent=59 // pred_check
          %p376 = pneg %p40
        $region62: #{tpu_custom_call.1} parent=59 // pred_check_branch
          %378 = sbr.rel (%p376) target = $region64
        $region63: #{tpu_custom_call.1} parent=59 // pred_region
          %s379 = smul.u32 4, %s20
          %p380 = scmp.lt.s32.totalorder %s379, 7
          %s381 = scalar_select %p380, %s379, 7
          %s382 = scalar_lea.vmem %s0, %s381
          %s383 = smul.u32 4, %s20
        $region64: #{tpu_custom_call.1} parent=59 // pred_fallthru
          _
        // Predicated region
        $region65: #{tpu_custom_call.1} parent=59 // pred_check
          %p384 = pneg %p66
        $region66: #{tpu_custom_call.1} parent=59 // pred_check_branch
          %386 = sbr.rel (%p384) target = $region68
        $region67: #{tpu_custom_call.1} parent=59 // pred_region
          %s387 = smul.u32 64, %s20
          %p388 = scmp.lt.s32.totalorder %s387, 127
          %s389 = scalar_select %p388, %s387, 127
          %s390 = smul.addr %s389, 4
          %s391 = scalar_lea.vmem %s1, %s390
          %s392 = smul.u32 64, %s20
        $region68: #{tpu_custom_call.1} parent=59 // pred_fallthru
          _
      $region60: #{tpu_custom_call.1} parent=5 // pred_fallthru
        _
      %p393 = scmp.le.s32.totalorder 1, %s20
      %p394 = scmp.lt.s32.totalorder %s20, 3
      %p395 = pnand %p393, %p394
      %p396 = pneg %p395
      // Predicated region
      $region69: #{tpu_custom_call.1} parent=5 // pred_check
        _
      $region70: #{tpu_custom_call.1} parent=5 // pred_check_branch
        %398 = sbr.rel (%p395) target = $region72
      $region71: #{tpu_custom_call.1} parent=5 // pred_region
        %s399 = ssub.s32 %s20, 1
        %s400 = smul.u32 4, %s25
        %p401 = scmp.lt.s32.totalorder %s400, 7
        %s402 = scalar_select %p401, %s400, 7
        %s403 = scalar_lea.vmem %s0, %s402
        %p404 = pneg %p46
        %p405 = pneg %p43
        %s406 = smul.u32 64, %s25
        %p407 = scmp.lt.s32.totalorder %s406, 127
        %s408 = scalar_select %p407, %s406, 127
        %s409 = smul.addr %s408, 4
        %s410 = scalar_lea.vmem %s1, %s409
        %p411 = pneg %p72
        %p412 = pneg %p69
        %p413 = pneg %p93
        %p414 = pneg %p90
        %p415 = pneg %p114
        %p416 = pneg %p111
        %p417 = pneg %p135
        %p418 = pneg %p132
        %p419 = pneg %p156
        %p420 = pneg %p153
        %p421 = pneg %p177
        %p422 = pneg %p174
        %p423 = pneg %p198
        %p424 = pneg %p195
        %p425 = pneg %p219
        %p426 = pneg %p216
        %p427 = pneg %p240
        %p428 = pneg %p237
        %p429 = pneg %p261
        %p430 = pneg %p258
        %p431 = pneg %p282
        %p432 = pneg %p279
        %p433 = pneg %p303
        %p434 = pneg %p300
        %p435 = pneg %p324
        %p436 = pneg %p321
        %s437 = smul.u32 4, %s25
        %p438 = scmp.lt.s32.totalorder %s437, 7
        %s439 = scalar_select %p438, %s437, 7
        %s440 = scalar_lea.vmem %s0, %s439
        %s441 = smul.u32 4, %s25
        %s442 = smul.u32 64, %s25
        %p443 = scmp.lt.s32.totalorder %s442, 127
        %s444 = scalar_select %p443, %s442, 127
        %s445 = smul.addr %s444, 4
        %s446 = scalar_lea.vmem %s1, %s445
        %s447 = smul.u32 64, %s25
        %p449 = scmp.eq.s32.totalorder %s25, 0
        // Predicated region
        $region73: #{tpu_custom_call.1} parent=71 // pred_check
          %p450 = pneg %p449
        $region74: #{tpu_custom_call.1} parent=71 // pred_check_branch
          %452 = sbr.rel (%p450) target = $region76
        $region75: #{tpu_custom_call.1} parent=71 // pred_region
          %453 = vst [vmem:[#allocation2] sm:$0xff] 0.0
          %454 = vst [vmem:[#allocation2 + $0x8] sm:$0xff] 0.0
          %455 = vst [vmem:[#allocation2 + $0x10] sm:$0xff] 0.0
          %456 = vst [vmem:[#allocation2 + $0x18] sm:$0xff] 0.0
          %457 = vst [vmem:[#allocation2 + $0x20] sm:$0xff] 0.0
          %458 = vst [vmem:[#allocation2 + $0x28] sm:$0xff] 0.0
          %459 = vst [vmem:[#allocation2 + $0x30] sm:$0xff] 0.0
          %460 = vst [vmem:[#allocation2 + $0x38] sm:$0xff] 0.0
        $region76: #{tpu_custom_call.1} parent=71 // pred_fallthru
          _
        %v461 = vld [vmem:[%s446] sm:$0xf]
        %v462 = vld [vmem:[%s446 + $0x4] sm:$0xf]
        %v463 = vld [vmem:[%s446 + $0x8] sm:$0xf]
        %v464 = vld [vmem:[%s446 + $0xc] sm:$0xf]
        %v465 = vld [vmem:[%s446 + $0x10] sm:$0xf]
        %v466 = vld [vmem:[%s446 + $0x14] sm:$0xf]
        %v467 = vld [vmem:[%s446 + $0x18] sm:$0xf]
        %v468 = vld [vmem:[%s446 + $0x1c] sm:$0xf]
        %v469 = vld [vmem:[%s446 + $0x20] sm:$0xf]
        %v470 = vld [vmem:[%s446 + $0x24] sm:$0xf]
        %v471 = vld [vmem:[%s446 + $0x28] sm:$0xf]
        %v472 = vld [vmem:[%s446 + $0x2c] sm:$0xf]
        %v473 = vld [vmem:[%s446 + $0x30] sm:$0xf]
        %v474 = vld [vmem:[%s446 + $0x34] sm:$0xf]
        %v475 = vld [vmem:[%s446 + $0x38] sm:$0xf]
        %v476 = vld [vmem:[%s446 + $0x3c] sm:$0xf]
        %v477 = vld [vmem:[%s446 + $0x40] sm:$0xf]
        %v478 = vld [vmem:[%s446 + $0x44] sm:$0xf]
        %v479 = vld [vmem:[%s446 + $0x48] sm:$0xf]
        %v480 = vld [vmem:[%s446 + $0x4c] sm:$0xf]
        %v481 = vld [vmem:[%s446 + $0x50] sm:$0xf]
        %v482 = vld [vmem:[%s446 + $0x54] sm:$0xf]
        %v483 = vld [vmem:[%s446 + $0x58] sm:$0xf]
        %v484 = vld [vmem:[%s446 + $0x5c] sm:$0xf]
        %v485 = vld [vmem:[%s446 + $0x60] sm:$0xf]
        %v486 = vld [vmem:[%s446 + $0x64] sm:$0xf]
        %v487 = vld [vmem:[%s446 + $0x68] sm:$0xf]
        %v488 = vld [vmem:[%s446 + $0x6c] sm:$0xf]
        %v489 = vld [vmem:[%s446 + $0x70] sm:$0xf]
        %v490 = vld [vmem:[%s446 + $0x74] sm:$0xf]
        %v491 = vld [vmem:[%s446 + $0x78] sm:$0xf]
        %v492 = vld [vmem:[%s446 + $0x7c] sm:$0xf]
        %v493 = vld [vmem:[%s446 + $0x80] sm:$0xf]
        %v494 = vld [vmem:[%s446 + $0x84] sm:$0xf]
        %v495 = vld [vmem:[%s446 + $0x88] sm:$0xf]
        %v496 = vld [vmem:[%s446 + $0x8c] sm:$0xf]
        %v497 = vld [vmem:[%s446 + $0x90] sm:$0xf]
        %v498 = vld [vmem:[%s446 + $0x94] sm:$0xf]
        %v499 = vld [vmem:[%s446 + $0x98] sm:$0xf]
        %v500 = vld [vmem:[%s446 + $0x9c] sm:$0xf]
        %v501 = vld [vmem:[%s446 + $0xa0] sm:$0xf]
        %v502 = vld [vmem:[%s446 + $0xa4] sm:$0xf]
        %v503 = vld [vmem:[%s446 + $0xa8] sm:$0xf]
        %v504 = vld [vmem:[%s446 + $0xac] sm:$0xf]
        %v505 = vld [vmem:[%s446 + $0xb0] sm:$0xf]
        %v506 = vld [vmem:[%s446 + $0xb4] sm:$0xf]
        %v507 = vld [vmem:[%s446 + $0xb8] sm:$0xf]
        %v508 = vld [vmem:[%s446 + $0xbc] sm:$0xf]
        %v509 = vld [vmem:[%s446 + $0xc0] sm:$0xf]
        %v510 = vld [vmem:[%s446 + $0xc4] sm:$0xf]
        %v511 = vld [vmem:[%s446 + $0xc8] sm:$0xf]
        %v512 = vld [vmem:[%s446 + $0xcc] sm:$0xf]
        %v513 = vld [vmem:[%s446 + $0xd0] sm:$0xf]
        %v514 = vld [vmem:[%s446 + $0xd4] sm:$0xf]
        %v515 = vld [vmem:[%s446 + $0xd8] sm:$0xf]
        %v516 = vld [vmem:[%s446 + $0xdc] sm:$0xf]
        %v517 = vld [vmem:[%s446 + $0xe0] sm:$0xf]
        %v518 = vld [vmem:[%s446 + $0xe4] sm:$0xf]
        %v519 = vld [vmem:[%s446 + $0xe8] sm:$0xf]
        %v520 = vld [vmem:[%s446 + $0xec] sm:$0xf]
        %v521 = vld [vmem:[%s446 + $0xf0] sm:$0xf]
        %v522 = vld [vmem:[%s446 + $0xf4] sm:$0xf]
        %v523 = vld [vmem:[%s446 + $0xf8] sm:$0xf]
        %v524 = vld [vmem:[%s446 + $0xfc] sm:$0xf]
        %v525 = vld [vmem:[%s4] sm:$0xf]
        %v526 = vld [vmem:[%s4 + $0x4] sm:$0xf]
        %v527 = vld [vmem:[%s5] sm:$0x1]
        %v529 = vlaneseq
        %v530 = vshrl.u32 %v529, 7
        %v531 = vsub.s32 0, %v530
        %v532 = vrot.slane %v527, %v531
        %v598 = vunpack.c.l.b16 %v461
        %v599 = vunpack.c.l.b16 %v462
        %v600 = vunpack.c.l.b16 %v463
        %v601 = vunpack.c.l.b16 %v464
        %v602 = vunpack.c.l.b16 %v465
        %v603 = vunpack.c.l.b16 %v466
        %v604 = vunpack.c.l.b16 %v467
        %v605 = vunpack.c.l.b16 %v468
        %v606 = vunpack.c.l.b16 %v469
        %v607 = vunpack.c.l.b16 %v470
        %v608 = vunpack.c.l.b16 %v471
        %v609 = vunpack.c.l.b16 %v472
        %v610 = vunpack.c.l.b16 %v473
        %v611 = vunpack.c.l.b16 %v474
        %v612 = vunpack.c.l.b16 %v475
        %v613 = vunpack.c.l.b16 %v476
        %v614 = vunpack.c.l.b16 %v477
        %v615 = vunpack.c.l.b16 %v478
        %v616 = vunpack.c.l.b16 %v479
        %v617 = vunpack.c.l.b16 %v480
        %v618 = vunpack.c.l.b16 %v481
        %v619 = vunpack.c.l.b16 %v482
        %v620 = vunpack.c.l.b16 %v483
        %v621 = vunpack.c.l.b16 %v484
        %v622 = vunpack.c.l.b16 %v485
        %v623 = vunpack.c.l.b16 %v486
        %v624 = vunpack.c.l.b16 %v487
        %v625 = vunpack.c.l.b16 %v488
        %v626 = vunpack.c.l.b16 %v489
        %v627 = vunpack.c.l.b16 %v490
        %v628 = vunpack.c.l.b16 %v491
        %v629 = vunpack.c.l.b16 %v492
        %v630 = vunpack.c.l.b16 %v493
        %v631 = vunpack.c.l.b16 %v494
        %v632 = vunpack.c.l.b16 %v495
        %v633 = vunpack.c.l.b16 %v496
        %v634 = vunpack.c.l.b16 %v497
        %v635 = vunpack.c.l.b16 %v498
        %v636 = vunpack.c.l.b16 %v499
        %v637 = vunpack.c.l.b16 %v500
        %v638 = vunpack.c.l.b16 %v501
        %v639 = vunpack.c.l.b16 %v502
        %v640 = vunpack.c.l.b16 %v503
        %v641 = vunpack.c.l.b16 %v504
        %v642 = vunpack.c.l.b16 %v505
        %v643 = vunpack.c.l.b16 %v506
        %v644 = vunpack.c.l.b16 %v507
        %v645 = vunpack.c.l.b16 %v508
        %v646 = vunpack.c.l.b16 %v509
        %v647 = vunpack.c.l.b16 %v510
        %v648 = vunpack.c.l.b16 %v511
        %v649 = vunpack.c.l.b16 %v512
        %v650 = vunpack.c.l.b16 %v513
        %v651 = vunpack.c.l.b16 %v514
        %v652 = vunpack.c.l.b16 %v515
        %v653 = vunpack.c.l.b16 %v516
        %v654 = vunpack.c.l.b16 %v517
        %v655 = vunpack.c.l.b16 %v518
        %v656 = vunpack.c.l.b16 %v519
        %v657 = vunpack.c.l.b16 %v520
        %v658 = vunpack.c.l.b16 %v521
        %v659 = vunpack.c.l.b16 %v522
        %v660 = vunpack.c.l.b16 %v523
        %v661 = vunpack.c.l.b16 %v524
        %v662 = vpack.c.b16 %v599, %v598
        %v663 = vpack.c.b16 %v601, %v600
        %v664 = vpack.c.b16 %v603, %v602
        %v665 = vpack.c.b16 %v605, %v604
        %v666 = vpack.c.b16 %v607, %v606
        %v667 = vpack.c.b16 %v609, %v608
        %v668 = vpack.c.b16 %v611, %v610
        %v669 = vpack.c.b16 %v613, %v612
        %v670 = vpack.c.b16 %v615, %v614
        %v671 = vpack.c.b16 %v617, %v616
        %v672 = vpack.c.b16 %v619, %v618
        %v673 = vpack.c.b16 %v621, %v620
        %v674 = vpack.c.b16 %v623, %v622
        %v675 = vpack.c.b16 %v625, %v624
        %v676 = vpack.c.b16 %v627, %v626
        %v677 = vpack.c.b16 %v629, %v628
        %v678 = vpack.c.b16 %v631, %v630
        %v679 = vpack.c.b16 %v633, %v632
        %v680 = vpack.c.b16 %v635, %v634
        %v681 = vpack.c.b16 %v637, %v636
        %v682 = vpack.c.b16 %v639, %v638
        %v683 = vpack.c.b16 %v641, %v640
        %v684 = vpack.c.b16 %v643, %v642
        %v685 = vpack.c.b16 %v645, %v644
        %v686 = vpack.c.b16 %v647, %v646
        %v687 = vpack.c.b16 %v649, %v648
        %v688 = vpack.c.b16 %v651, %v650
        %v689 = vpack.c.b16 %v653, %v652
        %v690 = vpack.c.b16 %v655, %v654
        %v691 = vpack.c.b16 %v657, %v656
        %v692 = vpack.c.b16 %v659, %v658
        %v693 = vpack.c.b16 %v661, %v660
        %v696 = vunpack.c.l.b16 %v525
        %v697 = vunpack.c.l.b16 %v526
        %v698 = vpack.c.b16 %v697, %v696
        %vm700 = vcmask 130048
        %v702 = vsel %vm700, %v662, 0
        %v705 = vsel %vm700, %v663, 0
        %v708 = vsel %vm700, %v664, 0
        %v711 = vsel %vm700, %v665, 0
        %v714 = vsel %vm700, %v666, 0
        %v717 = vsel %vm700, %v667, 0
        %v720 = vsel %vm700, %v668, 0
        %v723 = vsel %vm700, %v669, 0
        %v726 = vsel %vm700, %v670, 0
        %v729 = vsel %vm700, %v671, 0
        %v732 = vsel %vm700, %v672, 0
        %v735 = vsel %vm700, %v673, 0
        %v738 = vsel %vm700, %v674, 0
        %v741 = vsel %vm700, %v675, 0
        %v744 = vsel %vm700, %v676, 0
        %v747 = vsel %vm700, %v677, 0
        %v750 = vsel %vm700, %v678, 0
        %v753 = vsel %vm700, %v679, 0
        %v756 = vsel %vm700, %v680, 0
        %v759 = vsel %vm700, %v681, 0
        %v762 = vsel %vm700, %v682, 0
        %v765 = vsel %vm700, %v683, 0
        %v768 = vsel %vm700, %v684, 0
        %v771 = vsel %vm700, %v685, 0
        %v774 = vsel %vm700, %v686, 0
        %v777 = vsel %vm700, %v687, 0
        %v780 = vsel %vm700, %v688, 0
        %v783 = vsel %vm700, %v689, 0
        %v786 = vsel %vm700, %v690, 0
        %v789 = vsel %vm700, %v691, 0
        %v792 = vsel %vm700, %v692, 0
        %v795 = vsel %vm700, %v693, 0
        %797 = vmatprep.subr.bf16.mxu0 0
        %798 = vmatpush1.bf16.msra.mxu0 %v698
        %799 = vmatprep.subr.bf16.mxu0 0
        %800 = vmatpush1.bf16.msra.mxu0 0
        %801 = vmatprep.subr.bf16.mxu0 0
        %802 = vmatpush1.bf16.msra.mxu0 0
        %803 = vmatprep.subr.bf16.mxu0 0
        %804 = vmatpush1.bf16.msra.mxu0 0
        %805 = vmatprep.subr.bf16.mxu0 0
        %806 = vmatpush1.bf16.msra.mxu0 0
        %807 = vmatprep.subr.bf16.mxu0 0
        %808 = vmatpush1.bf16.msra.mxu0 0
        %809 = vmatprep.subr.bf16.mxu0 0
        %810 = vmatpush1.bf16.msra.mxu0 0
        %811 = vmatprep.subr.bf16.mxu0 0
        %812 = vmatpush1.bf16.msra.mxu0 0
        %813 = vmatprep.subr.bf16.mxu0 0
        %814 = vmatpush1.bf16.msra.mxu0 0
        %815 = vmatprep.subr.bf16.mxu0 0
        %816 = vmatpush1.bf16.msra.mxu0 0
        %817 = vmatprep.subr.bf16.mxu0 0
        %818 = vmatpush1.bf16.msra.mxu0 0
        %819 = vmatprep.subr.bf16.mxu0 0
        %820 = vmatpush1.bf16.msra.mxu0 0
        %821 = vmatprep.subr.bf16.mxu0 0
        %822 = vmatpush1.bf16.msra.mxu0 0
        %823 = vmatprep.subr.bf16.mxu0 0
        %824 = vmatpush1.bf16.msra.mxu0 0
        %825 = vmatprep.subr.bf16.mxu0 0
        %826 = vmatpush1.bf16.msra.mxu0 0
        %827 = vmatprep.subr.bf16.mxu0 0
        %828 = vmatpush1.bf16.msra.mxu0 0
        %829 = vmatprep.mubr.bf16.mxu0 0
        %830 = vmatmul.mubr.bf16.gmra.mrb[0].mxu0 %v702
        %v831 = vpop.f32.mrb[0].mxu0
        %v832 = vadd.f32 %v532, %v831
        %v833 = vpop.f32.mrb[0].mxu0
        %v834 = vpop.f32.mrb[0].mxu0
        %v835 = vadd.f32 %v532, %v834
        %v836 = vpop.f32.mrb[0].mxu0
        %837 = vmatprep.mubr.bf16.mxu0 0
        %838 = vmatmul.mubr.bf16.gmra.mrb[0].mxu0 %v705
        %v839 = vpop.f32.mrb[0].mxu0
        %v840 = vadd.f32 %v532, %v839
        %v841 = vpop.f32.mrb[0].mxu0
        %v842 = vpop.f32.mrb[0].mxu0
        %v843 = vadd.f32 %v532, %v842
        %v844 = vpop.f32.mrb[0].mxu0
        %845 = vmatprep.mubr.bf16.mxu0 0
        %846 = vmatmul.mubr.bf16.gmra.mrb[0].mxu0 %v708
        %v847 = vpop.f32.mrb[0].mxu0
        %v848 = vadd.f32 %v532, %v847
        %v849 = vpop.f32.mrb[0].mxu0
        %v850 = vpop.f32.mrb[0].mxu0
        %v851 = vadd.f32 %v532, %v850
        %v852 = vpop.f32.mrb[0].mxu0
        %853 = vmatprep.mubr.bf16.mxu0 0
        %854 = vmatmul.mubr.bf16.gmra.mrb[0].mxu0 %v711
        %v855 = vpop.f32.mrb[0].mxu0
        %v856 = vadd.f32 %v532, %v855
        %v857 = vpop.f32.mrb[0].mxu0
        %v858 = vpop.f32.mrb[0].mxu0
        %v859 = vadd.f32 %v532, %v858
        %v860 = vpop.f32.mrb[0].mxu0
        %861 = vmatprep.mubr.bf16.mxu0 0
        %862 = vmatmul.mubr.bf16.gmra.mrb[0].mxu0 %v714
        %v863 = vpop.f32.mrb[0].mxu0
        %v864 = vadd.f32 %v532, %v863
        %v865 = vpop.f32.mrb[0].mxu0
        %v866 = vpop.f32.mrb[0].mxu0
        %v867 = vadd.f32 %v532, %v866
        %v868 = vpop.f32.mrb[0].mxu0
        %869 = vmatprep.mubr.bf16.mxu0 0
        %870 = vmatmul.mubr.bf16.gmra.mrb[0].mxu0 %v717
        %v871 = vpop.f32.mrb[0].mxu0
        %v872 = vadd.f32 %v532, %v871
        %v873 = vpop.f32.mrb[0].mxu0
        %v874 = vpop.f32.mrb[0].mxu0
        %v875 = vadd.f32 %v532, %v874
        %v876 = vpop.f32.mrb[0].mxu0
        %877 = vmatprep.mubr.bf16.mxu0 0
        %878 = vmatmul.mubr.bf16.gmra.mrb[0].mxu0 %v720
        %v879 = vpop.f32.mrb[0].mxu0
        %v880 = vadd.f32 %v532, %v879
        %v881 = vpop.f32.mrb[0].mxu0
        %v882 = vpop.f32.mrb[0].mxu0
        %v883 = vadd.f32 %v532, %v882
        %v884 = vpop.f32.mrb[0].mxu0
        %885 = vmatprep.mubr.bf16.mxu0 0
        %886 = vmatmul.mubr.bf16.gmra.mrb[0].mxu0 %v723
        %v887 = vpop.f32.mrb[0].mxu0
        %v888 = vadd.f32 %v532, %v887
        %v889 = vpop.f32.mrb[0].mxu0
        %v890 = vpop.f32.mrb[0].mxu0
        %v891 = vadd.f32 %v532, %v890
        %v892 = vpop.f32.mrb[0].mxu0
        %893 = vmatprep.mubr.bf16.mxu0 0
        %894 = vmatmul.mubr.bf16.gmra.mrb[0].mxu0 %v726
        %v895 = vpop.f32.mrb[0].mxu0
        %v896 = vadd.f32 %v532, %v895
        %v897 = vpop.f32.mrb[0].mxu0
        %v898 = vpop.f32.mrb[0].mxu0
        %v899 = vadd.f32 %v532, %v898
        %v900 = vpop.f32.mrb[0].mxu0
        %901 = vmatprep.mubr.bf16.mxu0 0
        %902 = vmatmul.mubr.bf16.gmra.mrb[0].mxu0 %v729
        %v903 = vpop.f32.mrb[0].mxu0
        %v904 = vadd.f32 %v532, %v903
        %v905 = vpop.f32.mrb[0].mxu0
        %v906 = vpop.f32.mrb[0].mxu0
        %v907 = vadd.f32 %v532, %v906
        %v908 = vpop.f32.mrb[0].mxu0
        %909 = vmatprep.mubr.bf16.mxu0 0
        %910 = vmatmul.mubr.bf16.gmra.mrb[0].mxu0 %v732
        %v911 = vpop.f32.mrb[0].mxu0
        %v912 = vadd.f32 %v532, %v911
        %v913 = vpop.f32.mrb[0].mxu0
        %v914 = vpop.f32.mrb[0].mxu0
        %v915 = vadd.f32 %v532, %v914
        %v916 = vpop.f32.mrb[0].mxu0
        %917 = vmatprep.mubr.bf16.mxu0 0
        %918 = vmatmul.mubr.bf16.gmra.mrb[0].mxu0 %v735
        %v919 = vpop.f32.mrb[0].mxu0
        %v920 = vadd.f32 %v532, %v919
        %v921 = vpop.f32.mrb[0].mxu0
        %v922 = vpop.f32.mrb[0].mxu0
        %v923 = vadd.f32 %v532, %v922
        %v924 = vpop.f32.mrb[0].mxu0
        %925 = vmatprep.mubr.bf16.mxu0 0
        %926 = vmatmul.mubr.bf16.gmra.mrb[0].mxu0 %v738
        %v927 = vpop.f32.mrb[0].mxu0
        %v928 = vadd.f32 %v532, %v927
        %v929 = vpop.f32.mrb[0].mxu0
        %v930 = vpop.f32.mrb[0].mxu0
        %v931 = vadd.f32 %v532, %v930
        %v932 = vpop.f32.mrb[0].mxu0
        %933 = vmatprep.mubr.bf16.mxu0 0
        %934 = vmatmul.mubr.bf16.gmra.mrb[0].mxu0 %v741
        %v935 = vpop.f32.mrb[0].mxu0
        %v936 = vadd.f32 %v532, %v935
        %v937 = vpop.f32.mrb[0].mxu0
        %v938 = vpop.f32.mrb[0].mxu0
        %v939 = vadd.f32 %v532, %v938
        %v940 = vpop.f32.mrb[0].mxu0
        %941 = vmatprep.mubr.bf16.mxu0 0
        %942 = vmatmul.mubr.bf16.gmra.mrb[0].mxu0 %v744
        %v943 = vpop.f32.mrb[0].mxu0
        %v944 = vadd.f32 %v532, %v943
        %v945 = vpop.f32.mrb[0].mxu0
        %v946 = vpop.f32.mrb[0].mxu0
        %v947 = vadd.f32 %v532, %v946
        %v948 = vpop.f32.mrb[0].mxu0
        %949 = vmatprep.mubr.bf16.mxu0 0
        %950 = vmatmul.mubr.bf16.gmra.mrb[0].mxu0 %v747
        %v951 = vpop.f32.mrb[0].mxu0
        %v952 = vadd.f32 %v532, %v951
        %v953 = vpop.f32.mrb[0].mxu0
        %v954 = vpop.f32.mrb[0].mxu0
        %v955 = vadd.f32 %v532, %v954
        %v956 = vpop.f32.mrb[0].mxu0
        %957 = vmatprep.mubr.bf16.mxu0 0
        %958 = vmatmul.mubr.bf16.gmra.mrb[0].mxu0 %v750
        %v959 = vpop.f32.mrb[0].mxu0
        %v960 = vadd.f32 %v532, %v959
        %v961 = vpop.f32.mrb[0].mxu0
        %v962 = vpop.f32.mrb[0].mxu0
        %v963 = vadd.f32 %v532, %v962
        %v964 = vpop.f32.mrb[0].mxu0
        %965 = vmatprep.mubr.bf16.mxu0 0
        %966 = vmatmul.mubr.bf16.gmra.mrb[0].mxu0 %v753
        %v967 = vpop.f32.mrb[0].mxu0
        %v968 = vadd.f32 %v532, %v967
        %v969 = vpop.f32.mrb[0].mxu0
        %v970 = vpop.f32.mrb[0].mxu0
        %v971 = vadd.f32 %v532, %v970
        %v972 = vpop.f32.mrb[0].mxu0
        %973 = vmatprep.mubr.bf16.mxu0 0
        %974 = vmatmul.mubr.bf16.gmra.mrb[0].mxu0 %v756
        %v975 = vpop.f32.mrb[0].mxu0
        %v976 = vadd.f32 %v532, %v975
        %v977 = vpop.f32.mrb[0].mxu0
        %v978 = vpop.f32.mrb[0].mxu0
        %v979 = vadd.f32 %v532, %v978
        %v980 = vpop.f32.mrb[0].mxu0
        %981 = vmatprep.mubr.bf16.mxu0 0
        %982 = vmatmul.mubr.bf16.gmra.mrb[0].mxu0 %v759
        %v983 = vpop.f32.mrb[0].mxu0
        %v984 = vadd.f32 %v532, %v983
        %v985 = vpop.f32.mrb[0].mxu0
        %v986 = vpop.f32.mrb[0].mxu0
        %v987 = vadd.f32 %v532, %v986
        %v988 = vpop.f32.mrb[0].mxu0
        %989 = vmatprep.mubr.bf16.mxu0 0
        %990 = vmatmul.mubr.bf16.gmra.mrb[0].mxu0 %v762
        %v991 = vpop.f32.mrb[0].mxu0
        %v992 = vadd.f32 %v532, %v991
        %v993 = vpop.f32.mrb[0].mxu0
        %v994 = vpop.f32.mrb[0].mxu0
        %v995 = vadd.f32 %v532, %v994
        %v996 = vpop.f32.mrb[0].mxu0
        %997 = vmatprep.mubr.bf16.mxu0 0
        %998 = vmatmul.mubr.bf16.gmra.mrb[0].mxu0 %v765
        %v999 = vpop.f32.mrb[0].mxu0
        %v1000 = vadd.f32 %v532, %v999
        %v1001 = vpop.f32.mrb[0].mxu0
        %v1002 = vpop.f32.mrb[0].mxu0
        %v1003 = vadd.f32 %v532, %v1002
        %v1004 = vpop.f32.mrb[0].mxu0
        %1005 = vmatprep.mubr.bf16.mxu0 0
        %1006 = vmatmul.mubr.bf16.gmra.mrb[0].mxu0 %v768
        %v1007 = vpop.f32.mrb[0].mxu0
        %v1008 = vadd.f32 %v532, %v1007
        %v1009 = vpop.f32.mrb[0].mxu0
        %v1010 = vpop.f32.mrb[0].mxu0
        %v1011 = vadd.f32 %v532, %v1010
        %v1012 = vpop.f32.mrb[0].mxu0
        %1013 = vmatprep.mubr.bf16.mxu0 0
        %1014 = vmatmul.mubr.bf16.gmra.mrb[0].mxu0 %v771
        %v1015 = vpop.f32.mrb[0].mxu0
        %v1016 = vadd.f32 %v532, %v1015
        %v1017 = vpop.f32.mrb[0].mxu0
        %v1018 = vpop.f32.mrb[0].mxu0
        %v1019 = vadd.f32 %v532, %v1018
        %v1020 = vpop.f32.mrb[0].mxu0
        %1021 = vmatprep.mubr.bf16.mxu0 0
        %1022 = vmatmul.mubr.bf16.gmra.mrb[0].mxu0 %v774
        %v1023 = vpop.f32.mrb[0].mxu0
        %v1024 = vadd.f32 %v532, %v1023
        %v1025 = vpop.f32.mrb[0].mxu0
        %v1026 = vpop.f32.mrb[0].mxu0
        %v1027 = vadd.f32 %v532, %v1026
        %v1028 = vpop.f32.mrb[0].mxu0
        %1029 = vmatprep.mubr.bf16.mxu0 0
        %1030 = vmatmul.mubr.bf16.gmra.mrb[0].mxu0 %v777
        %v1031 = vpop.f32.mrb[0].mxu0
        %v1032 = vadd.f32 %v532, %v1031
        %v1033 = vpop.f32.mrb[0].mxu0
        %v1034 = vpop.f32.mrb[0].mxu0
        %v1035 = vadd.f32 %v532, %v1034
        %v1036 = vpop.f32.mrb[0].mxu0
        %1037 = vmatprep.mubr.bf16.mxu0 0
        %1038 = vmatmul.mubr.bf16.gmra.mrb[0].mxu0 %v780
        %v1039 = vpop.f32.mrb[0].mxu0
        %v1040 = vadd.f32 %v532, %v1039
        %v1041 = vpop.f32.mrb[0].mxu0
        %v1042 = vpop.f32.mrb[0].mxu0
        %v1043 = vadd.f32 %v532, %v1042
        %v1044 = vpop.f32.mrb[0].mxu0
        %1045 = vmatprep.mubr.bf16.mxu0 0
        %1046 = vmatmul.mubr.bf16.gmra.mrb[0].mxu0 %v783
        %v1047 = vpop.f32.mrb[0].mxu0
        %v1048 = vadd.f32 %v532, %v1047
        %v1049 = vpop.f32.mrb[0].mxu0
        %v1050 = vpop.f32.mrb[0].mxu0
        %v1051 = vadd.f32 %v532, %v1050
        %v1052 = vpop.f32.mrb[0].mxu0
        %1053 = vmatprep.mubr.bf16.mxu0 0
        %1054 = vmatmul.mubr.bf16.gmra.mrb[0].mxu0 %v786
        %v1055 = vpop.f32.mrb[0].mxu0
        %v1056 = vadd.f32 %v532, %v1055
        %v1057 = vpop.f32.mrb[0].mxu0
        %v1058 = vpop.f32.mrb[0].mxu0
        %v1059 = vadd.f32 %v532, %v1058
        %v1060 = vpop.f32.mrb[0].mxu0
        %1061 = vmatprep.mubr.bf16.mxu0 0
        %1062 = vmatmul.mubr.bf16.gmra.mrb[0].mxu0 %v789
        %v1063 = vpop.f32.mrb[0].mxu0
        %v1064 = vadd.f32 %v532, %v1063
        %v1065 = vpop.f32.mrb[0].mxu0
        %v1066 = vpop.f32.mrb[0].mxu0
        %v1067 = vadd.f32 %v532, %v1066
        %v1068 = vpop.f32.mrb[0].mxu0
        %1069 = vmatprep.mubr.bf16.mxu0 0
        %1070 = vmatmul.mubr.bf16.gmra.mrb[0].mxu0 %v792
        %v1071 = vpop.f32.mrb[0].mxu0
        %v1072 = vadd.f32 %v532, %v1071
        %v1073 = vpop.f32.mrb[0].mxu0
        %v1074 = vpop.f32.mrb[0].mxu0
        %v1075 = vadd.f32 %v532, %v1074
        %v1076 = vpop.f32.mrb[0].mxu0
        %1077 = vmatprep.mubr.bf16.mxu0 0
        %1078 = vmatmul.mubr.bf16.gmra.mrb[0].mxu0 %v795
        %v1079 = vpop.f32.mrb[0].mxu0
        %v1080 = vadd.f32 %v532, %v1079
        %v1081 = vpop.f32.mrb[0].mxu0
        %v1082 = vpop.f32.mrb[0].mxu0
        %v1083 = vadd.f32 %v532, %v1082
        %v1084 = vpop.f32.mrb[0].mxu0
        %1085 = vdwg.mxu0
        %v1086 = vmax.f32 %v832, 0.0
        %v1087 = vmax.f32 %v835, 0.0
        %v1088 = vmax.f32 %v840, 0.0
        %v1089 = vmax.f32 %v843, 0.0
        %v1090 = vmax.f32 %v848, 0.0
        %v1091 = vmax.f32 %v851, 0.0
        %v1092 = vmax.f32 %v856, 0.0
        %v1093 = vmax.f32 %v859, 0.0
        %v1094 = vmax.f32 %v864, 0.0
        %v1095 = vmax.f32 %v867, 0.0
        %v1096 = vmax.f32 %v872, 0.0
        %v1097 = vmax.f32 %v875, 0.0
        %v1098 = vmax.f32 %v880, 0.0
        %v1099 = vmax.f32 %v883, 0.0
        %v1100 = vmax.f32 %v888, 0.0
        %v1101 = vmax.f32 %v891, 0.0
        %v1102 = vmax.f32 %v896, 0.0
        %v1103 = vmax.f32 %v899, 0.0
        %v1104 = vmax.f32 %v904, 0.0
        %v1105 = vmax.f32 %v907, 0.0
        %v1106 = vmax.f32 %v912, 0.0
        %v1107 = vmax.f32 %v915, 0.0
        %v1108 = vmax.f32 %v920, 0.0
        %v1109 = vmax.f32 %v923, 0.0
        %v1110 = vmax.f32 %v928, 0.0
        %v1111 = vmax.f32 %v931, 0.0
        %v1112 = vmax.f32 %v936, 0.0
        %v1113 = vmax.f32 %v939, 0.0
        %v1114 = vmax.f32 %v944, 0.0
        %v1115 = vmax.f32 %v947, 0.0
        %v1116 = vmax.f32 %v952, 0.0
        %v1117 = vmax.f32 %v955, 0.0
        %v1118 = vmax.f32 %v960, 0.0
        %v1119 = vmax.f32 %v963, 0.0
        %v1120 = vmax.f32 %v968, 0.0
        %v1121 = vmax.f32 %v971, 0.0
        %v1122 = vmax.f32 %v976, 0.0
        %v1123 = vmax.f32 %v979, 0.0
        %v1124 = vmax.f32 %v984, 0.0
        %v1125 = vmax.f32 %v987, 0.0
        %v1126 = vmax.f32 %v992, 0.0
        %v1127 = vmax.f32 %v995, 0.0
        %v1128 = vmax.f32 %v1000, 0.0
        %v1129 = vmax.f32 %v1003, 0.0
        %v1130 = vmax.f32 %v1008, 0.0
        %v1131 = vmax.f32 %v1011, 0.0
        %v1132 = vmax.f32 %v1016, 0.0
        %v1133 = vmax.f32 %v1019, 0.0
        %v1134 = vmax.f32 %v1024, 0.0
        %v1135 = vmax.f32 %v1027, 0.0
        %v1136 = vmax.f32 %v1032, 0.0
        %v1137 = vmax.f32 %v1035, 0.0
        %v1138 = vmax.f32 %v1040, 0.0
        %v1139 = vmax.f32 %v1043, 0.0
        %v1140 = vmax.f32 %v1048, 0.0
        %v1141 = vmax.f32 %v1051, 0.0
        %v1142 = vmax.f32 %v1056, 0.0
        %v1143 = vmax.f32 %v1059, 0.0
        %v1144 = vmax.f32 %v1064, 0.0
        %v1145 = vmax.f32 %v1067, 0.0
        %v1146 = vmax.f32 %v1072, 0.0
        %v1147 = vmax.f32 %v1075, 0.0
        %v1148 = vmax.f32 %v1080, 0.0
        %v1149 = vmax.f32 %v1083, 0.0
        %v1150 = vpack.c.bf16 %v1087, %v1086
        %v1151 = vpack.c.bf16 %v1089, %v1088
        %v1152 = vpack.c.bf16 %v1091, %v1090
        %v1153 = vpack.c.bf16 %v1093, %v1092
        %v1154 = vpack.c.bf16 %v1095, %v1094
        %v1155 = vpack.c.bf16 %v1097, %v1096
        %v1156 = vpack.c.bf16 %v1099, %v1098
        %v1157 = vpack.c.bf16 %v1101, %v1100
        %v1158 = vpack.c.bf16 %v1103, %v1102
        %v1159 = vpack.c.bf16 %v1105, %v1104
        %v1160 = vpack.c.bf16 %v1107, %v1106
        %v1161 = vpack.c.bf16 %v1109, %v1108
        %v1162 = vpack.c.bf16 %v1111, %v1110
        %v1163 = vpack.c.bf16 %v1113, %v1112
        %v1164 = vpack.c.bf16 %v1115, %v1114
        %v1165 = vpack.c.bf16 %v1117, %v1116
        %v1166 = vpack.c.bf16 %v1119, %v1118
        %v1167 = vpack.c.bf16 %v1121, %v1120
        %v1168 = vpack.c.bf16 %v1123, %v1122
        %v1169 = vpack.c.bf16 %v1125, %v1124
        %v1170 = vpack.c.bf16 %v1127, %v1126
        %v1171 = vpack.c.bf16 %v1129, %v1128
        %v1172 = vpack.c.bf16 %v1131, %v1130
        %v1173 = vpack.c.bf16 %v1133, %v1132
        %v1174 = vpack.c.bf16 %v1135, %v1134
        %v1175 = vpack.c.bf16 %v1137, %v1136
        %v1176 = vpack.c.bf16 %v1139, %v1138
        %v1177 = vpack.c.bf16 %v1141, %v1140
        %v1178 = vpack.c.bf16 %v1143, %v1142
        %v1179 = vpack.c.bf16 %v1145, %v1144
        %v1180 = vpack.c.bf16 %v1147, %v1146
        %v1181 = vpack.c.bf16 %v1149, %v1148
        %v1182 = vld [vmem:[%s6] sm:$0xf]
        %v1183 = vld [vmem:[%s6 + $0x4] sm:$0xf]
        %v1184 = vld [vmem:[%s6 + $0x8] sm:$0xf]
        %v1185 = vld [vmem:[%s6 + $0xc] sm:$0xf]
        %v1186 = vld [vmem:[%s6 + $0x10] sm:$0xf]
        %v1187 = vld [vmem:[%s6 + $0x14] sm:$0xf]
        %v1188 = vld [vmem:[%s6 + $0x18] sm:$0xf]
        %v1189 = vld [vmem:[%s6 + $0x1c] sm:$0xf]
        %v1190 = vld [vmem:[%s6 + $0x20] sm:$0xf]
        %v1191 = vld [vmem:[%s6 + $0x24] sm:$0xf]
        %v1192 = vld [vmem:[%s6 + $0x28] sm:$0xf]
        %v1193 = vld [vmem:[%s6 + $0x2c] sm:$0xf]
        %v1194 = vld [vmem:[%s6 + $0x30] sm:$0xf]
        %v1195 = vld [vmem:[%s6 + $0x34] sm:$0xf]
        %v1196 = vld [vmem:[%s6 + $0x38] sm:$0xf]
        %v1197 = vld [vmem:[%s6 + $0x3c] sm:$0xf]
        %v1198 = vld [vmem:[%s7] sm:$0x1]
        %v1200 = vlaneseq
        %v1201 = vshrl.u32 %v1200, 7
        %v1202 = vsub.s32 0, %v1201
        %v1203 = vrot.slane %v1198, %v1202
        %v1221 = vunpack.c.l.b16 %v1182
        %v1222 = vunpack.c.l.b16 %v1183
        %v1223 = vunpack.c.l.b16 %v1184
        %v1224 = vunpack.c.l.b16 %v1185
        %v1225 = vunpack.c.l.b16 %v1186
        %v1226 = vunpack.c.l.b16 %v1187
        %v1227 = vunpack.c.l.b16 %v1188
        %v1228 = vunpack.c.l.b16 %v1189
        %v1229 = vunpack.c.l.b16 %v1190
        %v1230 = vunpack.c.l.b16 %v1191
        %v1231 = vunpack.c.l.b16 %v1192
        %v1232 = vunpack.c.l.b16 %v1193
        %v1233 = vunpack.c.l.b16 %v1194
        %v1234 = vunpack.c.l.b16 %v1195
        %v1235 = vunpack.c.l.b16 %v1196
        %v1236 = vunpack.c.l.b16 %v1197
        %v1237 = vpack.c.b16 %v1222, %v1221
        %v1238 = vpack.c.b16 %v1224, %v1223
        %v1239 = vpack.c.b16 %v1226, %v1225
        %v1240 = vpack.c.b16 %v1228, %v1227
        %v1241 = vpack.c.b16 %v1230, %v1229
        %v1242 = vpack.c.b16 %v1232, %v1231
        %v1243 = vpack.c.b16 %v1234, %v1233
        %v1244 = vpack.c.b16 %v1236, %v1235
        %1253 = vmatprep.subr.bf16.mxu0 0
        %1254 = vmatpush1.bf16.msra.mxu0 %v1237
        %1255 = vmatprep.subr.bf16.mxu0 0
        %1256 = vmatpush1.bf16.msra.mxu0 %v1238
        %1257 = vmatprep.subr.bf16.mxu0 0
        %1258 = vmatpush1.bf16.msra.mxu0 %v1239
        %1259 = vmatprep.subr.bf16.mxu0 0
        %1260 = vmatpush1.bf16.msra.mxu0 %v1240
        %1261 = vmatprep.subr.bf16.mxu0 0
        %1262 = vmatpush1.bf16.msra.mxu0 %v1241
        %1263 = vmatprep.subr.bf16.mxu0 0
        %1264 = vmatpush1.bf16.msra.mxu0 %v1242
        %1265 = vmatprep.subr.bf16.mxu0 0
        %1266 = vmatpush1.bf16.msra.mxu0 %v1243
        %1267 = vmatprep.subr.bf16.mxu0 0
        %1268 = vmatpush1.bf16.msra.mxu0 %v1244
        %1269 = vmatprep.subr.bf16.mxu0 0
        %1270 = vmatpush1.bf16.msra.mxu0 0
        %1271 = vmatprep.subr.bf16.mxu0 0
        %1272 = vmatpush1.bf16.msra.mxu0 0
        %1273 = vmatprep.subr.bf16.mxu0 0
        %1274 = vmatpush1.bf16.msra.mxu0 0
        %1275 = vmatprep.subr.bf16.mxu0 0
        %1276 = vmatpush1.bf16.msra.mxu0 0
        %1277 = vmatprep.subr.bf16.mxu0 0
        %1278 = vmatpush1.bf16.msra.mxu0 0
        %1279 = vmatprep.subr.bf16.mxu0 0
        %1280 = vmatpush1.bf16.msra.mxu0 0
        %1281 = vmatprep.subr.bf16.mxu0 0
        %1282 = vmatpush1.bf16.msra.mxu0 0
        %1283 = vmatprep.subr.bf16.mxu0 0
        %1284 = vmatpush1.bf16.msra.mxu0 0
        %1285 = vmatprep.mubr.bf16.mxu0 0
        %1286 = vmatmul.mubr.bf16.gmra.mrb[0].mxu0 %v1150
        %v1287 = vpop.f32.mrb[0].mxu0
        %v1288 = vadd.f32 %v1203, %v1287
        %v1289 = vpop.f32.mrb[0].mxu0
        %v1290 = vpop.f32.mrb[0].mxu0
        %v1291 = vadd.f32 %v1203, %v1290
        %v1292 = vpop.f32.mrb[0].mxu0
        %1293 = vmatprep.mubr.bf16.mxu0 0
        %1294 = vmatmul.mubr.bf16.gmra.mrb[0].mxu0 %v1151
        %v1295 = vpop.f32.mrb[0].mxu0
        %v1296 = vadd.f32 %v1203, %v1295
        %v1297 = vpop.f32.mrb[0].mxu0
        %v1298 = vpop.f32.mrb[0].mxu0
        %v1299 = vadd.f32 %v1203, %v1298
        %v1300 = vpop.f32.mrb[0].mxu0
        %1301 = vmatprep.mubr.bf16.mxu0 0
        %1302 = vmatmul.mubr.bf16.gmra.mrb[0].mxu0 %v1152
        %v1303 = vpop.f32.mrb[0].mxu0
        %v1304 = vadd.f32 %v1203, %v1303
        %v1305 = vpop.f32.mrb[0].mxu0
        %v1306 = vpop.f32.mrb[0].mxu0
        %v1307 = vadd.f32 %v1203, %v1306
        %v1308 = vpop.f32.mrb[0].mxu0
        %1309 = vmatprep.mubr.bf16.mxu0 0
        %1310 = vmatmul.mubr.bf16.gmra.mrb[0].mxu0 %v1153
        %v1311 = vpop.f32.mrb[0].mxu0
        %v1312 = vadd.f32 %v1203, %v1311
        %v1313 = vpop.f32.mrb[0].mxu0
        %v1314 = vpop.f32.mrb[0].mxu0
        %v1315 = vadd.f32 %v1203, %v1314
        %v1316 = vpop.f32.mrb[0].mxu0
        %1317 = vmatprep.mubr.bf16.mxu0 0
        %1318 = vmatmul.mubr.bf16.gmra.mrb[0].mxu0 %v1154
        %v1319 = vpop.f32.mrb[0].mxu0
        %v1320 = vadd.f32 %v1203, %v1319
        %v1321 = vpop.f32.mrb[0].mxu0
        %v1322 = vpop.f32.mrb[0].mxu0
        %v1323 = vadd.f32 %v1203, %v1322
        %v1324 = vpop.f32.mrb[0].mxu0
        %1325 = vmatprep.mubr.bf16.mxu0 0
        %1326 = vmatmul.mubr.bf16.gmra.mrb[0].mxu0 %v1155
        %v1327 = vpop.f32.mrb[0].mxu0
        %v1328 = vadd.f32 %v1203, %v1327
        %v1329 = vpop.f32.mrb[0].mxu0
        %v1330 = vpop.f32.mrb[0].mxu0
        %v1331 = vadd.f32 %v1203, %v1330
        %v1332 = vpop.f32.mrb[0].mxu0
        %1333 = vmatprep.mubr.bf16.mxu0 0
        %1334 = vmatmul.mubr.bf16.gmra.mrb[0].mxu0 %v1156
        %v1335 = vpop.f32.mrb[0].mxu0
        %v1336 = vadd.f32 %v1203, %v1335
        %v1337 = vpop.f32.mrb[0].mxu0
        %v1338 = vpop.f32.mrb[0].mxu0
        %v1339 = vadd.f32 %v1203, %v1338
        %v1340 = vpop.f32.mrb[0].mxu0
        %1341 = vmatprep.mubr.bf16.mxu0 0
        %1342 = vmatmul.mubr.bf16.gmra.mrb[0].mxu0 %v1157
        %v1343 = vpop.f32.mrb[0].mxu0
        %v1344 = vadd.f32 %v1203, %v1343
        %v1345 = vpop.f32.mrb[0].mxu0
        %v1346 = vpop.f32.mrb[0].mxu0
        %v1347 = vadd.f32 %v1203, %v1346
        %v1348 = vpop.f32.mrb[0].mxu0
        %1349 = vmatprep.mubr.bf16.mxu0 0
        %1350 = vmatmul.mubr.bf16.gmra.mrb[0].mxu0 %v1158
        %v1351 = vpop.f32.mrb[0].mxu0
        %v1352 = vadd.f32 %v1203, %v1351
        %v1353 = vpop.f32.mrb[0].mxu0
        %v1354 = vpop.f32.mrb[0].mxu0
        %v1355 = vadd.f32 %v1203, %v1354
        %v1356 = vpop.f32.mrb[0].mxu0
        %1357 = vmatprep.mubr.bf16.mxu0 0
        %1358 = vmatmul.mubr.bf16.gmra.mrb[0].mxu0 %v1159
        %v1359 = vpop.f32.mrb[0].mxu0
        %v1360 = vadd.f32 %v1203, %v1359
        %v1361 = vpop.f32.mrb[0].mxu0
        %v1362 = vpop.f32.mrb[0].mxu0
        %v1363 = vadd.f32 %v1203, %v1362
        %v1364 = vpop.f32.mrb[0].mxu0
        %1365 = vmatprep.mubr.bf16.mxu0 0
        %1366 = vmatmul.mubr.bf16.gmra.mrb[0].mxu0 %v1160
        %v1367 = vpop.f32.mrb[0].mxu0
        %v1368 = vadd.f32 %v1203, %v1367
        %v1369 = vpop.f32.mrb[0].mxu0
        %v1370 = vpop.f32.mrb[0].mxu0
        %v1371 = vadd.f32 %v1203, %v1370
        %v1372 = vpop.f32.mrb[0].mxu0
        %1373 = vmatprep.mubr.bf16.mxu0 0
        %1374 = vmatmul.mubr.bf16.gmra.mrb[0].mxu0 %v1161
        %v1375 = vpop.f32.mrb[0].mxu0
        %v1376 = vadd.f32 %v1203, %v1375
        %v1377 = vpop.f32.mrb[0].mxu0
        %v1378 = vpop.f32.mrb[0].mxu0
        %v1379 = vadd.f32 %v1203, %v1378
        %v1380 = vpop.f32.mrb[0].mxu0
        %1381 = vmatprep.mubr.bf16.mxu0 0
        %1382 = vmatmul.mubr.bf16.gmra.mrb[0].mxu0 %v1162
        %v1383 = vpop.f32.mrb[0].mxu0
        %v1384 = vadd.f32 %v1203, %v1383
        %v1385 = vpop.f32.mrb[0].mxu0
        %v1386 = vpop.f32.mrb[0].mxu0
        %v1387 = vadd.f32 %v1203, %v1386
        %v1388 = vpop.f32.mrb[0].mxu0
        %1389 = vmatprep.mubr.bf16.mxu0 0
        %1390 = vmatmul.mubr.bf16.gmra.mrb[0].mxu0 %v1163
        %v1391 = vpop.f32.mrb[0].mxu0
        %v1392 = vadd.f32 %v1203, %v1391
        %v1393 = vpop.f32.mrb[0].mxu0
        %v1394 = vpop.f32.mrb[0].mxu0
        %v1395 = vadd.f32 %v1203, %v1394
        %v1396 = vpop.f32.mrb[0].mxu0
        %1397 = vmatprep.mubr.bf16.mxu0 0
        %1398 = vmatmul.mubr.bf16.gmra.mrb[0].mxu0 %v1164
        %v1399 = vpop.f32.mrb[0].mxu0
        %v1400 = vadd.f32 %v1203, %v1399
        %v1401 = vpop.f32.mrb[0].mxu0
        %v1402 = vpop.f32.mrb[0].mxu0
        %v1403 = vadd.f32 %v1203, %v1402
        %v1404 = vpop.f32.mrb[0].mxu0
        %1405 = vmatprep.mubr.bf16.mxu0 0
        %1406 = vmatmul.mubr.bf16.gmra.mrb[0].mxu0 %v1165
        %v1407 = vpop.f32.mrb[0].mxu0
        %v1408 = vadd.f32 %v1203, %v1407
        %v1409 = vpop.f32.mrb[0].mxu0
        %v1410 = vpop.f32.mrb[0].mxu0
        %v1411 = vadd.f32 %v1203, %v1410
        %v1412 = vpop.f32.mrb[0].mxu0
        %1413 = vmatprep.mubr.bf16.mxu0 0
        %1414 = vmatmul.mubr.bf16.gmra.mrb[0].mxu0 %v1166
        %v1415 = vpop.f32.mrb[0].mxu0
        %v1416 = vadd.f32 %v1203, %v1415
        %v1417 = vpop.f32.mrb[0].mxu0
        %v1418 = vpop.f32.mrb[0].mxu0
        %v1419 = vadd.f32 %v1203, %v1418
        %v1420 = vpop.f32.mrb[0].mxu0
        %1421 = vmatprep.mubr.bf16.mxu0 0
        %1422 = vmatmul.mubr.bf16.gmra.mrb[0].mxu0 %v1167
        %v1423 = vpop.f32.mrb[0].mxu0
        %v1424 = vadd.f32 %v1203, %v1423
        %v1425 = vpop.f32.mrb[0].mxu0
        %v1426 = vpop.f32.mrb[0].mxu0
        %v1427 = vadd.f32 %v1203, %v1426
        %v1428 = vpop.f32.mrb[0].mxu0
        %1429 = vmatprep.mubr.bf16.mxu0 0
        %1430 = vmatmul.mubr.bf16.gmra.mrb[0].mxu0 %v1168
        %v1431 = vpop.f32.mrb[0].mxu0
        %v1432 = vadd.f32 %v1203, %v1431
        %v1433 = vpop.f32.mrb[0].mxu0
        %v1434 = vpop.f32.mrb[0].mxu0
        %v1435 = vadd.f32 %v1203, %v1434
        %v1436 = vpop.f32.mrb[0].mxu0
        %1437 = vmatprep.mubr.bf16.mxu0 0
        %1438 = vmatmul.mubr.bf16.gmra.mrb[0].mxu0 %v1169
        %v1439 = vpop.f32.mrb[0].mxu0
        %v1440 = vadd.f32 %v1203, %v1439
        %v1441 = vpop.f32.mrb[0].mxu0
        %v1442 = vpop.f32.mrb[0].mxu0
        %v1443 = vadd.f32 %v1203, %v1442
        %v1444 = vpop.f32.mrb[0].mxu0
        %1445 = vmatprep.mubr.bf16.mxu0 0
        %1446 = vmatmul.mubr.bf16.gmra.mrb[0].mxu0 %v1170
        %v1447 = vpop.f32.mrb[0].mxu0
        %v1448 = vadd.f32 %v1203, %v1447
        %v1449 = vpop.f32.mrb[0].mxu0
        %v1450 = vpop.f32.mrb[0].mxu0
        %v1451 = vadd.f32 %v1203, %v1450
        %v1452 = vpop.f32.mrb[0].mxu0
        %1453 = vmatprep.mubr.bf16.mxu0 0
        %1454 = vmatmul.mubr.bf16.gmra.mrb[0].mxu0 %v1171
        %v1455 = vpop.f32.mrb[0].mxu0
        %v1456 = vadd.f32 %v1203, %v1455
        %v1457 = vpop.f32.mrb[0].mxu0
        %v1458 = vpop.f32.mrb[0].mxu0
        %v1459 = vadd.f32 %v1203, %v1458
        %v1460 = vpop.f32.mrb[0].mxu0
        %1461 = vmatprep.mubr.bf16.mxu0 0
        %1462 = vmatmul.mubr.bf16.gmra.mrb[0].mxu0 %v1172
        %v1463 = vpop.f32.mrb[0].mxu0
        %v1464 = vadd.f32 %v1203, %v1463
        %v1465 = vpop.f32.mrb[0].mxu0
        %v1466 = vpop.f32.mrb[0].mxu0
        %v1467 = vadd.f32 %v1203, %v1466
        %v1468 = vpop.f32.mrb[0].mxu0
        %1469 = vmatprep.mubr.bf16.mxu0 0
        %1470 = vmatmul.mubr.bf16.gmra.mrb[0].mxu0 %v1173
        %v1471 = vpop.f32.mrb[0].mxu0
        %v1472 = vadd.f32 %v1203, %v1471
        %v1473 = vpop.f32.mrb[0].mxu0
        %v1474 = vpop.f32.mrb[0].mxu0
        %v1475 = vadd.f32 %v1203, %v1474
        %v1476 = vpop.f32.mrb[0].mxu0
        %1477 = vmatprep.mubr.bf16.mxu0 0
        %1478 = vmatmul.mubr.bf16.gmra.mrb[0].mxu0 %v1174
        %v1479 = vpop.f32.mrb[0].mxu0
        %v1480 = vadd.f32 %v1203, %v1479
        %v1481 = vpop.f32.mrb[0].mxu0
        %v1482 = vpop.f32.mrb[0].mxu0
        %v1483 = vadd.f32 %v1203, %v1482
        %v1484 = vpop.f32.mrb[0].mxu0
        %1485 = vmatprep.mubr.bf16.mxu0 0
        %1486 = vmatmul.mubr.bf16.gmra.mrb[0].mxu0 %v1175
        %v1487 = vpop.f32.mrb[0].mxu0
        %v1488 = vadd.f32 %v1203, %v1487
        %v1489 = vpop.f32.mrb[0].mxu0
        %v1490 = vpop.f32.mrb[0].mxu0
        %v1491 = vadd.f32 %v1203, %v1490
        %v1492 = vpop.f32.mrb[0].mxu0
        %1493 = vmatprep.mubr.bf16.mxu0 0
        %1494 = vmatmul.mubr.bf16.gmra.mrb[0].mxu0 %v1176
        %v1495 = vpop.f32.mrb[0].mxu0
        %v1496 = vadd.f32 %v1203, %v1495
        %v1497 = vpop.f32.mrb[0].mxu0
        %v1498 = vpop.f32.mrb[0].mxu0
        %v1499 = vadd.f32 %v1203, %v1498
        %v1500 = vpop.f32.mrb[0].mxu0
        %1501 = vmatprep.mubr.bf16.mxu0 0
        %1502 = vmatmul.mubr.bf16.gmra.mrb[0].mxu0 %v1177
        %v1503 = vpop.f32.mrb[0].mxu0
        %v1504 = vadd.f32 %v1203, %v1503
        %v1505 = vpop.f32.mrb[0].mxu0
        %v1506 = vpop.f32.mrb[0].mxu0
        %v1507 = vadd.f32 %v1203, %v1506
        %v1508 = vpop.f32.mrb[0].mxu0
        %1509 = vmatprep.mubr.bf16.mxu0 0
        %1510 = vmatmul.mubr.bf16.gmra.mrb[0].mxu0 %v1178
        %v1511 = vpop.f32.mrb[0].mxu0
        %v1512 = vadd.f32 %v1203, %v1511
        %v1513 = vpop.f32.mrb[0].mxu0
        %v1514 = vpop.f32.mrb[0].mxu0
        %v1515 = vadd.f32 %v1203, %v1514
        %v1516 = vpop.f32.mrb[0].mxu0
        %1517 = vmatprep.mubr.bf16.mxu0 0
        %1518 = vmatmul.mubr.bf16.gmra.mrb[0].mxu0 %v1179
        %v1519 = vpop.f32.mrb[0].mxu0
        %v1520 = vadd.f32 %v1203, %v1519
        %v1521 = vpop.f32.mrb[0].mxu0
        %v1522 = vpop.f32.mrb[0].mxu0
        %v1523 = vadd.f32 %v1203, %v1522
        %v1524 = vpop.f32.mrb[0].mxu0
        %1525 = vmatprep.mubr.bf16.mxu0 0
        %1526 = vmatmul.mubr.bf16.gmra.mrb[0].mxu0 %v1180
        %v1527 = vpop.f32.mrb[0].mxu0
        %v1528 = vadd.f32 %v1203, %v1527
        %v1529 = vpop.f32.mrb[0].mxu0
        %v1530 = vpop.f32.mrb[0].mxu0
        %v1531 = vadd.f32 %v1203, %v1530
        %v1532 = vpop.f32.mrb[0].mxu0
        %1533 = vmatprep.mubr.bf16.mxu0 0
        %1534 = vmatmul.mubr.bf16.gmra.mrb[0].mxu0 %v1181
        %v1535 = vpop.f32.mrb[0].mxu0
        %v1536 = vadd.f32 %v1203, %v1535
        %v1537 = vpop.f32.mrb[0].mxu0
        %v1538 = vpop.f32.mrb[0].mxu0
        %v1539 = vadd.f32 %v1203, %v1538
        %v1540 = vpop.f32.mrb[0].mxu0
        %1541 = vdwg.mxu0
        %v1542 = vmax.f32 %v1288, 0.0
        %v1543 = vmax.f32 %v1291, 0.0
        %v1544 = vmax.f32 %v1296, 0.0
        %v1545 = vmax.f32 %v1299, 0.0
        %v1546 = vmax.f32 %v1304, 0.0
        %v1547 = vmax.f32 %v1307, 0.0
        %v1548 = vmax.f32 %v1312, 0.0
        %v1549 = vmax.f32 %v1315, 0.0
        %v1550 = vmax.f32 %v1320, 0.0
        %v1551 = vmax.f32 %v1323, 0.0
        %v1552 = vmax.f32 %v1328, 0.0
        %v1553 = vmax.f32 %v1331, 0.0
        %v1554 = vmax.f32 %v1336, 0.0
        %v1555 = vmax.f32 %v1339, 0.0
        %v1556 = vmax.f32 %v1344, 0.0
        %v1557 = vmax.f32 %v1347, 0.0
        %v1558 = vmax.f32 %v1352, 0.0
        %v1559 = vmax.f32 %v1355, 0.0
        %v1560 = vmax.f32 %v1360, 0.0
        %v1561 = vmax.f32 %v1363, 0.0
        %v1562 = vmax.f32 %v1368, 0.0
        %v1563 = vmax.f32 %v1371, 0.0
        %v1564 = vmax.f32 %v1376, 0.0
        %v1565 = vmax.f32 %v1379, 0.0
        %v1566 = vmax.f32 %v1384, 0.0
        %v1567 = vmax.f32 %v1387, 0.0
        %v1568 = vmax.f32 %v1392, 0.0
        %v1569 = vmax.f32 %v1395, 0.0
        %v1570 = vmax.f32 %v1400, 0.0
        %v1571 = vmax.f32 %v1403, 0.0
        %v1572 = vmax.f32 %v1408, 0.0
        %v1573 = vmax.f32 %v1411, 0.0
        %v1574 = vmax.f32 %v1416, 0.0
        %v1575 = vmax.f32 %v1419, 0.0
        %v1576 = vmax.f32 %v1424, 0.0
        %v1577 = vmax.f32 %v1427, 0.0
        %v1578 = vmax.f32 %v1432, 0.0
        %v1579 = vmax.f32 %v1435, 0.0
        %v1580 = vmax.f32 %v1440, 0.0
        %v1581 = vmax.f32 %v1443, 0.0
        %v1582 = vmax.f32 %v1448, 0.0
        %v1583 = vmax.f32 %v1451, 0.0
        %v1584 = vmax.f32 %v1456, 0.0
        %v1585 = vmax.f32 %v1459, 0.0
        %v1586 = vmax.f32 %v1464, 0.0
        %v1587 = vmax.f32 %v1467, 0.0
        %v1588 = vmax.f32 %v1472, 0.0
        %v1589 = vmax.f32 %v1475, 0.0
        %v1590 = vmax.f32 %v1480, 0.0
        %v1591 = vmax.f32 %v1483, 0.0
        %v1592 = vmax.f32 %v1488, 0.0
        %v1593 = vmax.f32 %v1491, 0.0
        %v1594 = vmax.f32 %v1496, 0.0
        %v1595 = vmax.f32 %v1499, 0.0
        %v1596 = vmax.f32 %v1504, 0.0
        %v1597 = vmax.f32 %v1507, 0.0
        %v1598 = vmax.f32 %v1512, 0.0
        %v1599 = vmax.f32 %v1515, 0.0
        %v1600 = vmax.f32 %v1520, 0.0
        %v1601 = vmax.f32 %v1523, 0.0
        %v1602 = vmax.f32 %v1528, 0.0
        %v1603 = vmax.f32 %v1531, 0.0
        %v1604 = vmax.f32 %v1536, 0.0
        %v1605 = vmax.f32 %v1539, 0.0
        %v1606 = vld [vmem:[%s440] sm:$0xf]
        %v1607 = vlaneseq
        %v1608 = vshrl.u32 %v1607, 7
        %v1609 = vadd.s32 %v1608, 8
        %v1610 = vadd.s32 %v1608, 16
        %v1611 = vadd.s32 %v1608, 24
        %v1612 = vadd.s32 %v1608, 32
        %v1613 = vadd.s32 %v1608, 40
        %v1614 = vadd.s32 %v1608, 48
        %v1615 = vadd.s32 %v1608, 56
        %v1616 = vlaneseq
        %v1617 = vshrl.u32 %v1616, 7
        %v1618 = vsub.s32 0, %v1617
        %v1619 = vrot.slane %v1606, %v1618
        %v1620 = vlaneseq
        %v1621 = vshrl.u32 %v1620, 7
        %v1622 = vsub.s32 1, %v1621
        %v1623 = vrot.slane %v1606, %v1622
        %v1624 = vlaneseq
        %v1625 = vshrl.u32 %v1624, 7
        %v1626 = vsub.s32 2, %v1625
        %v1627 = vrot.slane %v1606, %v1626
        %v1628 = vlaneseq
        %v1629 = vshrl.u32 %v1628, 7
        %v1630 = vsub.s32 3, %v1629
        %v1631 = vrot.slane %v1606, %v1630
        %vm1632 = vcmp.eq.s32.totalorder %v1608, %v1619
        %vm1633 = vcmp.eq.s32.totalorder %v1608, %v1623
        %vm1634 = vcmp.eq.s32.totalorder %v1608, %v1627
        %vm1635 = vcmp.eq.s32.totalorder %v1608, %v1631
        %vm1636 = vcmp.eq.s32.totalorder %v1609, %v1619
        %vm1637 = vcmp.eq.s32.totalorder %v1609, %v1623
        %vm1638 = vcmp.eq.s32.totalorder %v1609, %v1627
        %vm1639 = vcmp.eq.s32.totalorder %v1609, %v1631
        %vm1640 = vcmp.eq.s32.totalorder %v1610, %v1619
        %vm1641 = vcmp.eq.s32.totalorder %v1610, %v1623
        %vm1642 = vcmp.eq.s32.totalorder %v1610, %v1627
        %vm1643 = vcmp.eq.s32.totalorder %v1610, %v1631
        %vm1644 = vcmp.eq.s32.totalorder %v1611, %v1619
        %vm1645 = vcmp.eq.s32.totalorder %v1611, %v1623
        %vm1646 = vcmp.eq.s32.totalorder %v1611, %v1627
        %vm1647 = vcmp.eq.s32.totalorder %v1611, %v1631
        %vm1648 = vcmp.eq.s32.totalorder %v1612, %v1619
        %vm1649 = vcmp.eq.s32.totalorder %v1612, %v1623
        %vm1650 = vcmp.eq.s32.totalorder %v1612, %v1627
        %vm1651 = vcmp.eq.s32.totalorder %v1612, %v1631
        %vm1652 = vcmp.eq.s32.totalorder %v1613, %v1619
        %vm1653 = vcmp.eq.s32.totalorder %v1613, %v1623
        %vm1654 = vcmp.eq.s32.totalorder %v1613, %v1627
        %vm1655 = vcmp.eq.s32.totalorder %v1613, %v1631
        %vm1656 = vcmp.eq.s32.totalorder %v1614, %v1619
        %vm1657 = vcmp.eq.s32.totalorder %v1614, %v1623
        %vm1658 = vcmp.eq.s32.totalorder %v1614, %v1627
        %vm1659 = vcmp.eq.s32.totalorder %v1614, %v1631
        %vm1660 = vcmp.eq.s32.totalorder %v1615, %v1619
        %vm1661 = vcmp.eq.s32.totalorder %v1615, %v1623
        %vm1662 = vcmp.eq.s32.totalorder %v1615, %v1627
        %vm1663 = vcmp.eq.s32.totalorder %v1615, %v1631
        %v1664 = vsel %vm1632, 1, 0
        %v1665 = vsel %vm1633, 1, 0
        %v1666 = vsel %vm1634, 1, 0
        %v1667 = vsel %vm1635, 1, 0
        %v1668 = vsel %vm1636, 1, 0
        %v1669 = vsel %vm1637, 1, 0
        %v1670 = vsel %vm1638, 1, 0
        %v1671 = vsel %vm1639, 1, 0
        %v1672 = vsel %vm1640, 1, 0
        %v1673 = vsel %vm1641, 1, 0
        %v1674 = vsel %vm1642, 1, 0
        %v1675 = vsel %vm1643, 1, 0
        %v1676 = vsel %vm1644, 1, 0
        %v1677 = vsel %vm1645, 1, 0
        %v1678 = vsel %vm1646, 1, 0
        %v1679 = vsel %vm1647, 1, 0
        %v1680 = vsel %vm1648, 1, 0
        %v1681 = vsel %vm1649, 1, 0
        %v1682 = vsel %vm1650, 1, 0
        %v1683 = vsel %vm1651, 1, 0
        %v1684 = vsel %vm1652, 1, 0
        %v1685 = vsel %vm1653, 1, 0
        %v1686 = vsel %vm1654, 1, 0
        %v1687 = vsel %vm1655, 1, 0
        %v1688 = vsel %vm1656, 1, 0
        %v1689 = vsel %vm1657, 1, 0
        %v1690 = vsel %vm1658, 1, 0
        %v1691 = vsel %vm1659, 1, 0
        %v1692 = vsel %vm1660, 1, 0
        %v1693 = vsel %vm1661, 1, 0
        %v1694 = vsel %vm1662, 1, 0
        %v1695 = vsel %vm1663, 1, 0
        %v1696 = vcvt.s32.f32 %v1664
        %v1697 = vcvt.s32.f32 %v1665
        %v1698 = vcvt.s32.f32 %v1666
        %v1699 = vcvt.s32.f32 %v1667
        %v1700 = vcvt.s32.f32 %v1668
        %v1701 = vcvt.s32.f32 %v1669
        %v1702 = vcvt.s32.f32 %v1670
        %v1703 = vcvt.s32.f32 %v1671
        %v1704 = vcvt.s32.f32 %v1672
        %v1705 = vcvt.s32.f32 %v1673
        %v1706 = vcvt.s32.f32 %v1674
        %v1707 = vcvt.s32.f32 %v1675
        %v1708 = vcvt.s32.f32 %v1676
        %v1709 = vcvt.s32.f32 %v1677
        %v1710 = vcvt.s32.f32 %v1678
        %v1711 = vcvt.s32.f32 %v1679
        %v1712 = vcvt.s32.f32 %v1680
        %v1713 = vcvt.s32.f32 %v1681
        %v1714 = vcvt.s32.f32 %v1682
        %v1715 = vcvt.s32.f32 %v1683
        %v1716 = vcvt.s32.f32 %v1684
        %v1717 = vcvt.s32.f32 %v1685
        %v1718 = vcvt.s32.f32 %v1686
        %v1719 = vcvt.s32.f32 %v1687
        %v1720 = vcvt.s32.f32 %v1688
        %v1721 = vcvt.s32.f32 %v1689
        %v1722 = vcvt.s32.f32 %v1690
        %v1723 = vcvt.s32.f32 %v1691
        %v1724 = vcvt.s32.f32 %v1692
        %v1725 = vcvt.s32.f32 %v1693
        %v1726 = vcvt.s32.f32 %v1694
        %v1727 = vcvt.s32.f32 %v1695
        %v1728 = vpack.c.bf16 %v1700, %v1696
        %v1729 = vpack.c.bf16 %v1701, %v1697
        %v1730 = vpack.c.bf16 %v1702, %v1698
        %v1731 = vpack.c.bf16 %v1703, %v1699
        %v1732 = vpack.c.bf16 %v1708, %v1704
        %v1733 = vpack.c.bf16 %v1709, %v1705
        %v1734 = vpack.c.bf16 %v1710, %v1706
        %v1735 = vpack.c.bf16 %v1711, %v1707
        %v1736 = vpack.c.bf16 %v1716, %v1712
        %v1737 = vpack.c.bf16 %v1717, %v1713
        %v1738 = vpack.c.bf16 %v1718, %v1714
        %v1739 = vpack.c.bf16 %v1719, %v1715
        %v1740 = vpack.c.bf16 %v1724, %v1720
        %v1741 = vpack.c.bf16 %v1725, %v1721
        %v1742 = vpack.c.bf16 %v1726, %v1722
        %v1743 = vpack.c.bf16 %v1727, %v1723
        %v1744 = vld [vmem:[#allocation2] sm:$0xff]
        %v1745 = vld [vmem:[#allocation2 + $0x8] sm:$0xff]
        %v1746 = vld [vmem:[#allocation2 + $0x10] sm:$0xff]
        %v1747 = vld [vmem:[#allocation2 + $0x18] sm:$0xff]
        %v1748 = vld [vmem:[#allocation2 + $0x20] sm:$0xff]
        %v1749 = vld [vmem:[#allocation2 + $0x28] sm:$0xff]
        %v1750 = vld [vmem:[#allocation2 + $0x30] sm:$0xff]
        %v1751 = vld [vmem:[#allocation2 + $0x38] sm:$0xff]
        %v1752 = vpack.c.bf16 %v1543, %v1542
        %v1753 = vpack.c.bf16 %v1545, %v1544
        %v1754 = vpack.c.bf16 %v1547, %v1546
        %v1755 = vpack.c.bf16 %v1549, %v1548
        %v1756 = vpack.c.bf16 %v1551, %v1550
        %v1757 = vpack.c.bf16 %v1553, %v1552
        %v1758 = vpack.c.bf16 %v1555, %v1554
        %v1759 = vpack.c.bf16 %v1557, %v1556
        %v1760 = vpack.c.bf16 %v1559, %v1558
        %v1761 = vpack.c.bf16 %v1561, %v1560
        %v1762 = vpack.c.bf16 %v1563, %v1562
        %v1763 = vpack.c.bf16 %v1565, %v1564
        %v1764 = vpack.c.bf16 %v1567, %v1566
        %v1765 = vpack.c.bf16 %v1569, %v1568
        %v1766 = vpack.c.bf16 %v1571, %v1570
        %v1767 = vpack.c.bf16 %v1573, %v1572
        %v1768 = vpack.c.bf16 %v1575, %v1574
        %v1769 = vpack.c.bf16 %v1577, %v1576
        %v1770 = vpack.c.bf16 %v1579, %v1578
        %v1771 = vpack.c.bf16 %v1581, %v1580
        %v1772 = vpack.c.bf16 %v1583, %v1582
        %v1773 = vpack.c.bf16 %v1585, %v1584
        %v1774 = vpack.c.bf16 %v1587, %v1586
        %v1775 = vpack.c.bf16 %v1589, %v1588
        %v1776 = vpack.c.bf16 %v1591, %v1590
        %v1777 = vpack.c.bf16 %v1593, %v1592
        %v1778 = vpack.c.bf16 %v1595, %v1594
        %v1779 = vpack.c.bf16 %v1597, %v1596
        %v1780 = vpack.c.bf16 %v1599, %v1598
        %v1781 = vpack.c.bf16 %v1601, %v1600
        %v1782 = vpack.c.bf16 %v1603, %v1602
        %v1783 = vpack.c.bf16 %v1605, %v1604
        %1784 = vmatprep.subr.bf16.mxu0 0
        %1785 = vmatpush1.bf16.msra.mxu0 %v1752
        %1786 = vmatprep.subr.bf16.mxu0 0
        %1787 = vmatpush1.bf16.msra.mxu0 %v1753
        %1788 = vmatprep.subr.bf16.mxu0 0
        %1789 = vmatpush1.bf16.msra.mxu0 %v1754
        %1790 = vmatprep.subr.bf16.mxu0 0
        %1791 = vmatpush1.bf16.msra.mxu0 %v1755
        %1792 = vmatprep.subr.bf16.mxu0 0
        %1793 = vmatpush1.bf16.msra.mxu0 %v1756
        %1794 = vmatprep.subr.bf16.mxu0 0
        %1795 = vmatpush1.bf16.msra.mxu0 %v1757
        %1796 = vmatprep.subr.bf16.mxu0 0
        %1797 = vmatpush1.bf16.msra.mxu0 %v1758
        %1798 = vmatprep.subr.bf16.mxu0 0
        %1799 = vmatpush1.bf16.msra.mxu0 %v1759
        %1800 = vmatprep.subr.bf16.mxu0 0
        %1801 = vmatpush1.bf16.msra.mxu0 %v1760
        %1802 = vmatprep.subr.bf16.mxu0 0
        %1803 = vmatpush1.bf16.msra.mxu0 %v1761
        %1804 = vmatprep.subr.bf16.mxu0 0
        %1805 = vmatpush1.bf16.msra.mxu0 %v1762
        %1806 = vmatprep.subr.bf16.mxu0 0
        %1807 = vmatpush1.bf16.msra.mxu0 %v1763
        %1808 = vmatprep.subr.bf16.mxu0 0
        %1809 = vmatpush1.bf16.msra.mxu0 %v1764
        %1810 = vmatprep.subr.bf16.mxu0 0
        %1811 = vmatpush1.bf16.msra.mxu0 %v1765
        %1812 = vmatprep.subr.bf16.mxu0 0
        %1813 = vmatpush1.bf16.msra.mxu0 %v1766
        %1814 = vmatprep.subr.bf16.mxu0 0
        %1815 = vmatpush1.bf16.msra.mxu0 %v1767
        %1816 = vmatprep.mubr.bf16.mxu0 %v1729
        %1817 = vmatmul.mubr.bf16.gmra.mrb[0].mxu0 %v1728
        %v1818 = vpop.f32.mrb[0].mxu0
        %v1819 = vadd.f32 0.0, %v1818
        %v1820 = vpop.f32.mrb[0].mxu0
        %v1821 = vpop.f32.mrb[0].mxu0
        %v1822 = vadd.f32 0.0, %v1821
        %v1823 = vpop.f32.mrb[0].mxu0
        %1824 = vmatprep.mubr.bf16.mxu0 %v1733
        %1825 = vmatmul.mubr.bf16.gmra.mrb[0].mxu0 %v1732
        %v1826 = vpop.f32.mrb[0].mxu0
        %v1827 = vadd.f32 0.0, %v1826
        %v1828 = vpop.f32.mrb[0].mxu0
        %v1829 = vpop.f32.mrb[0].mxu0
        %v1830 = vadd.f32 0.0, %v1829
        %v1831 = vpop.f32.mrb[0].mxu0
        %1832 = vmatprep.mubr.bf16.mxu0 %v1737
        %1833 = vmatmul.mubr.bf16.gmra.mrb[0].mxu0 %v1736
        %v1834 = vpop.f32.mrb[0].mxu0
        %v1835 = vadd.f32 0.0, %v1834
        %v1836 = vpop.f32.mrb[0].mxu0
        %v1837 = vpop.f32.mrb[0].mxu0
        %v1838 = vadd.f32 0.0, %v1837
        %v1839 = vpop.f32.mrb[0].mxu0
        %1840 = vmatprep.mubr.bf16.mxu0 %v1741
        %1841 = vmatmul.mubr.bf16.gmra.mrb[0].mxu0 %v1740
        %v1842 = vpop.f32.mrb[0].mxu0
        %v1843 = vadd.f32 0.0, %v1842
        %v1844 = vpop.f32.mrb[0].mxu0
        %v1845 = vpop.f32.mrb[0].mxu0
        %v1846 = vadd.f32 0.0, %v1845
        %v1847 = vpop.f32.mrb[0].mxu0
        %1848 = vdwg.mxu0
        %1849 = vmatprep.subr.bf16.mxu0 0
        %1850 = vmatpush1.bf16.msra.mxu0 %v1768
        %1851 = vmatprep.subr.bf16.mxu0 0
        %1852 = vmatpush1.bf16.msra.mxu0 %v1769
        %1853 = vmatprep.subr.bf16.mxu0 0
        %1854 = vmatpush1.bf16.msra.mxu0 %v1770
        %1855 = vmatprep.subr.bf16.mxu0 0
        %1856 = vmatpush1.bf16.msra.mxu0 %v1771
        %1857 = vmatprep.subr.bf16.mxu0 0
        %1858 = vmatpush1.bf16.msra.mxu0 %v1772
        %1859 = vmatprep.subr.bf16.mxu0 0
        %1860 = vmatpush1.bf16.msra.mxu0 %v1773
        %1861 = vmatprep.subr.bf16.mxu0 0
        %1862 = vmatpush1.bf16.msra.mxu0 %v1774
        %1863 = vmatprep.subr.bf16.mxu0 0
        %1864 = vmatpush1.bf16.msra.mxu0 %v1775
        %1865 = vmatprep.subr.bf16.mxu0 0
        %1866 = vmatpush1.bf16.msra.mxu0 %v1776
        %1867 = vmatprep.subr.bf16.mxu0 0
        %1868 = vmatpush1.bf16.msra.mxu0 %v1777
        %1869 = vmatprep.subr.bf16.mxu0 0
        %1870 = vmatpush1.bf16.msra.mxu0 %v1778
        %1871 = vmatprep.subr.bf16.mxu0 0
        %1872 = vmatpush1.bf16.msra.mxu0 %v1779
        %1873 = vmatprep.subr.bf16.mxu0 0
        %1874 = vmatpush1.bf16.msra.mxu0 %v1780
        %1875 = vmatprep.subr.bf16.mxu0 0
        %1876 = vmatpush1.bf16.msra.mxu0 %v1781
        %1877 = vmatprep.subr.bf16.mxu0 0
        %1878 = vmatpush1.bf16.msra.mxu0 %v1782
        %1879 = vmatprep.subr.bf16.mxu0 0
        %1880 = vmatpush1.bf16.msra.mxu0 %v1783
        %1881 = vmatprep.mubr.bf16.mxu0 %v1731
        %1882 = vmatmul.mubr.bf16.gmra.mrb[0].mxu0 %v1730
        %v1883 = vpop.f32.mrb[0].mxu0
        %v1884 = vadd.f32 %v1819, %v1883
        %v1885 = vpop.f32.mrb[0].mxu0
        %v1886 = vpop.f32.mrb[0].mxu0
        %v1887 = vadd.f32 %v1822, %v1886
        %v1888 = vpop.f32.mrb[0].mxu0
        %1889 = vmatprep.mubr.bf16.mxu0 %v1735
        %1890 = vmatmul.mubr.bf16.gmra.mrb[0].mxu0 %v1734
        %v1891 = vpop.f32.mrb[0].mxu0
        %v1892 = vadd.f32 %v1827, %v1891
        %v1893 = vpop.f32.mrb[0].mxu0
        %v1894 = vpop.f32.mrb[0].mxu0
        %v1895 = vadd.f32 %v1830, %v1894
        %v1896 = vpop.f32.mrb[0].mxu0
        %1897 = vmatprep.mubr.bf16.mxu0 %v1739
        %1898 = vmatmul.mubr.bf16.gmra.mrb[0].mxu0 %v1738
        %v1899 = vpop.f32.mrb[0].mxu0
        %v1900 = vadd.f32 %v1835, %v1899
        %v1901 = vpop.f32.mrb[0].mxu0
        %v1902 = vpop.f32.mrb[0].mxu0
        %v1903 = vadd.f32 %v1838, %v1902
        %v1904 = vpop.f32.mrb[0].mxu0
        %1905 = vmatprep.mubr.bf16.mxu0 %v1743
        %1906 = vmatmul.mubr.bf16.gmra.mrb[0].mxu0 %v1742
        %v1907 = vpop.f32.mrb[0].mxu0
        %v1908 = vadd.f32 %v1843, %v1907
        %v1909 = vpop.f32.mrb[0].mxu0
        %v1910 = vpop.f32.mrb[0].mxu0
        %v1911 = vadd.f32 %v1846, %v1910
        %v1912 = vpop.f32.mrb[0].mxu0
        %1913 = vdwg.mxu0
        %v1914 = vadd.f32 %v1744, %v1884
        %v1915 = vadd.f32 %v1745, %v1887
        %v1916 = vadd.f32 %v1746, %v1892
        %v1917 = vadd.f32 %v1747, %v1895
        %v1918 = vadd.f32 %v1748, %v1900
        %v1919 = vadd.f32 %v1749, %v1903
        %v1920 = vadd.f32 %v1750, %v1908
        %v1921 = vadd.f32 %v1751, %v1911
        %1922 = vst [vmem:[#allocation2] sm:$0xff] %v1914
        %1923 = vst [vmem:[#allocation2 + $0x8] sm:$0xff] %v1915
        %1924 = vst [vmem:[#allocation2 + $0x10] sm:$0xff] %v1916
        %1925 = vst [vmem:[#allocation2 + $0x18] sm:$0xff] %v1917
        %1926 = vst [vmem:[#allocation2 + $0x20] sm:$0xff] %v1918
        %1927 = vst [vmem:[#allocation2 + $0x28] sm:$0xff] %v1919
        %1928 = vst [vmem:[#allocation2 + $0x30] sm:$0xff] %v1920
        %1929 = vst [vmem:[#allocation2 + $0x38] sm:$0xff] %v1921
        %p1930 = scmp.eq.s32.totalorder %s25, 1
        // Predicated region
        $region77: #{tpu_custom_call.1} parent=71 // pred_check
          %p1931 = pneg %p1930
        $region78: #{tpu_custom_call.1} parent=71 // pred_check_branch
          %1933 = sbr.rel (%p1931) target = $region80
        $region79: #{tpu_custom_call.1} parent=71 // pred_region
          %v1934 = vld [vmem:[#allocation2] sm:$0xff]
          %v1935 = vld [vmem:[#allocation2 + $0x8] sm:$0xff]
          %v1936 = vld [vmem:[#allocation2 + $0x10] sm:$0xff]
          %v1937 = vld [vmem:[#allocation2 + $0x18] sm:$0xff]
          %v1938 = vld [vmem:[#allocation2 + $0x20] sm:$0xff]
          %v1939 = vld [vmem:[#allocation2 + $0x28] sm:$0xff]
          %v1940 = vld [vmem:[#allocation2 + $0x30] sm:$0xff]
          %v1941 = vld [vmem:[#allocation2 + $0x38] sm:$0xff]
          %v1942 = vld [vmem:[%s3] sm:$0xff]
          %v1943 = vld [vmem:[%s3 + $0x8] sm:$0xff]
          %v1944 = vld [vmem:[%s3 + $0x10] sm:$0xff]
          %v1945 = vld [vmem:[%s3 + $0x18] sm:$0xff]
          %v1946 = vld [vmem:[%s3 + $0x20] sm:$0xff]
          %v1947 = vld [vmem:[%s3 + $0x28] sm:$0xff]
          %v1948 = vld [vmem:[%s3 + $0x30] sm:$0xff]
          %v1949 = vld [vmem:[%s3 + $0x38] sm:$0xff]
          %1951 = vset.pattern.permute.xlu0 0
          %1952 = vperm.xlu0 %1951, %v1942
          %v1953 = vpop.permute.xlu0 %1952
          %1956 = vset.pattern.permute.xlu0 0
          %1957 = vperm.xlu0 %1956, %v1943
          %v1958 = vpop.permute.xlu0 %1957
          %1961 = vset.pattern.permute.xlu0 0
          %1962 = vperm.xlu0 %1961, %v1944
          %v1963 = vpop.permute.xlu0 %1962
          %1966 = vset.pattern.permute.xlu0 0
          %1967 = vperm.xlu0 %1966, %v1945
          %v1968 = vpop.permute.xlu0 %1967
          %1971 = vset.pattern.permute.xlu0 0
          %1972 = vperm.xlu0 %1971, %v1946
          %v1973 = vpop.permute.xlu0 %1972
          %1976 = vset.pattern.permute.xlu0 0
          %1977 = vperm.xlu0 %1976, %v1947
          %v1978 = vpop.permute.xlu0 %1977
          %1981 = vset.pattern.permute.xlu0 0
          %1982 = vperm.xlu0 %1981, %v1948
          %v1983 = vpop.permute.xlu0 %1982
          %1986 = vset.pattern.permute.xlu0 0
          %1987 = vperm.xlu0 %1986, %v1949
          %v1988 = vpop.permute.xlu0 %1987
          %v1990 = vmul.f32 %v1934, %v1953
          %v1991 = vmul.f32 %v1935, %v1958
          %v1992 = vmul.f32 %v1936, %v1963
          %v1993 = vmul.f32 %v1937, %v1968
          %v1994 = vmul.f32 %v1938, %v1973
          %v1995 = vmul.f32 %v1939, %v1978
          %v1996 = vmul.f32 %v1940, %v1983
          %v1997 = vmul.f32 %v1941, %v1988
          %v1998 = vpack.c.bf16 %v1991, %v1990
          %v1999 = vpack.c.bf16 %v1993, %v1992
          %v2000 = vpack.c.bf16 %v1995, %v1994
          %v2001 = vpack.c.bf16 %v1997, %v1996
          %v2002 = vld [vmem:[%s2] sm:$0xf]
          %v2003 = vld [vmem:[%s2 + $0x4] sm:$0xf]
          %v2004 = vld [vmem:[%s2 + $0x8] sm:$0xf]
          %v2005 = vld [vmem:[%s2 + $0xc] sm:$0xf]
          %v2006 = vld [vmem:[%s2 + $0x10] sm:$0xf]
          %v2007 = vld [vmem:[%s2 + $0x14] sm:$0xf]
          %v2008 = vld [vmem:[%s2 + $0x18] sm:$0xf]
          %v2009 = vld [vmem:[%s2 + $0x1c] sm:$0xf]
          %v2010 = vld [vmem:[%s8] sm:$0xf]
          %v2011 = vld [vmem:[%s8 + $0x4] sm:$0x3]
          %v2012 = vld [vmem:[%s9] sm:$0xf]
          %v2013 = vld [vmem:[%s9 + $0x4] sm:$0xf]
          %v2014 = vld [vmem:[%s9 + $0x8] sm:$0xf]
          %v2015 = vld [vmem:[%s9 + $0xc] sm:$0xf]
          %v2016 = vld [vmem:[%s9 + $0x10] sm:$0xf]
          %v2017 = vld [vmem:[%s9 + $0x14] sm:$0xf]
          %v2018 = vld [vmem:[%s9 + $0x18] sm:$0xf]
          %v2019 = vld [vmem:[%s9 + $0x1c] sm:$0xf]
          %v2020 = vld [vmem:[%s9 + $0x20] sm:$0xf]
          %v2021 = vld [vmem:[%s9 + $0x24] sm:$0xf]
          %v2022 = vld [vmem:[%s9 + $0x28] sm:$0xf]
          %v2023 = vld [vmem:[%s9 + $0x2c] sm:$0xf]
          %v2024 = vld [vmem:[%s9 + $0x30] sm:$0xf]
          %v2025 = vld [vmem:[%s9 + $0x34] sm:$0xf]
          %v2026 = vld [vmem:[%s9 + $0x38] sm:$0xf]
          %v2027 = vld [vmem:[%s9 + $0x3c] sm:$0xf]
          %v2044 = vunpack.c.l.b16 %v2012
          %v2045 = vunpack.c.l.b16 %v2013
          %v2046 = vunpack.c.l.b16 %v2014
          %v2047 = vunpack.c.l.b16 %v2015
          %v2048 = vunpack.c.l.b16 %v2016
          %v2049 = vunpack.c.l.b16 %v2017
          %v2050 = vunpack.c.l.b16 %v2018
          %v2051 = vunpack.c.l.b16 %v2019
          %v2052 = vunpack.c.l.b16 %v2020
          %v2053 = vunpack.c.l.b16 %v2021
          %v2054 = vunpack.c.l.b16 %v2022
          %v2055 = vunpack.c.l.b16 %v2023
          %v2056 = vunpack.c.l.b16 %v2024
          %v2057 = vunpack.c.l.b16 %v2025
          %v2058 = vunpack.c.l.b16 %v2026
          %v2059 = vunpack.c.l.b16 %v2027
          %v2060 = vpack.c.b16 %v2045, %v2044
          %v2061 = vpack.c.b16 %v2047, %v2046
          %v2062 = vpack.c.b16 %v2049, %v2048
          %v2063 = vpack.c.b16 %v2051, %v2050
          %v2064 = vpack.c.b16 %v2053, %v2052
          %v2065 = vpack.c.b16 %v2055, %v2054
          %v2066 = vpack.c.b16 %v2057, %v2056
          %v2067 = vpack.c.b16 %v2059, %v2058
          %2076 = vmatprep.subr.bf16.mxu0 0
          %2077 = vmatpush1.bf16.msra.mxu0 %v2060
          %2078 = vmatprep.subr.bf16.mxu0 0
          %2079 = vmatpush1.bf16.msra.mxu0 %v2061
          %2080 = vmatprep.subr.bf16.mxu0 0
          %2081 = vmatpush1.bf16.msra.mxu0 %v2062
          %2082 = vmatprep.subr.bf16.mxu0 0
          %2083 = vmatpush1.bf16.msra.mxu0 %v2063
          %2084 = vmatprep.subr.bf16.mxu0 0
          %2085 = vmatpush1.bf16.msra.mxu0 %v2064
          %2086 = vmatprep.subr.bf16.mxu0 0
          %2087 = vmatpush1.bf16.msra.mxu0 %v2065
          %2088 = vmatprep.subr.bf16.mxu0 0
          %2089 = vmatpush1.bf16.msra.mxu0 %v2066
          %2090 = vmatprep.subr.bf16.mxu0 0
          %2091 = vmatpush1.bf16.msra.mxu0 %v2067
          %2092 = vmatprep.subr.bf16.mxu0 0
          %2093 = vmatpush1.bf16.msra.mxu0 0
          %2094 = vmatprep.subr.bf16.mxu0 0
          %2095 = vmatpush1.bf16.msra.mxu0 0
          %2096 = vmatprep.subr.bf16.mxu0 0
          %2097 = vmatpush1.bf16.msra.mxu0 0
          %2098 = vmatprep.subr.bf16.mxu0 0
          %2099 = vmatpush1.bf16.msra.mxu0 0
          %2100 = vmatprep.subr.bf16.mxu0 0
          %2101 = vmatpush1.bf16.msra.mxu0 0
          %2102 = vmatprep.subr.bf16.mxu0 0
          %2103 = vmatpush1.bf16.msra.mxu0 0
          %2104 = vmatprep.subr.bf16.mxu0 0
          %2105 = vmatpush1.bf16.msra.mxu0 0
          %2106 = vmatprep.subr.bf16.mxu0 0
          %2107 = vmatpush1.bf16.msra.mxu0 0
          %2108 = vmatprep.mubr.bf16.mxu0 0
          %2109 = vmatmul.mubr.bf16.gmra.mrb[0].mxu0 %v1998
          %v2110 = vpop.f32.mrb[0].mxu0
          %v2111 = vadd.f32 0.0, %v2110
          %v2112 = vpop.f32.mrb[0].mxu0
          %v2113 = vpop.f32.mrb[0].mxu0
          %v2114 = vadd.f32 0.0, %v2113
          %v2115 = vpop.f32.mrb[0].mxu0
          %2116 = vmatprep.mubr.bf16.mxu0 0
          %2117 = vmatmul.mubr.bf16.gmra.mrb[0].mxu0 %v1999
          %v2118 = vpop.f32.mrb[0].mxu0
          %v2119 = vadd.f32 0.0, %v2118
          %v2120 = vpop.f32.mrb[0].mxu0
          %v2121 = vpop.f32.mrb[0].mxu0
          %v2122 = vadd.f32 0.0, %v2121
          %v2123 = vpop.f32.mrb[0].mxu0
          %2124 = vmatprep.mubr.bf16.mxu0 0
          %2125 = vmatmul.mubr.bf16.gmra.mrb[0].mxu0 %v2000
          %v2126 = vpop.f32.mrb[0].mxu0
          %v2127 = vadd.f32 0.0, %v2126
          %v2128 = vpop.f32.mrb[0].mxu0
          %v2129 = vpop.f32.mrb[0].mxu0
          %v2130 = vadd.f32 0.0, %v2129
          %v2131 = vpop.f32.mrb[0].mxu0
          %2132 = vmatprep.mubr.bf16.mxu0 0
          %2133 = vmatmul.mubr.bf16.gmra.mrb[0].mxu0 %v2001
          %v2134 = vpop.f32.mrb[0].mxu0
          %v2135 = vadd.f32 0.0, %v2134
          %v2136 = vpop.f32.mrb[0].mxu0
          %v2137 = vpop.f32.mrb[0].mxu0
          %v2138 = vadd.f32 0.0, %v2137
          %v2139 = vpop.f32.mrb[0].mxu0
          %2140 = vdwg.mxu0
          %v2149 = vunpack.c.l.b16 %v2002
          %v2150 = vunpack.c.l.b16 %v2003
          %v2151 = vunpack.c.l.b16 %v2004
          %v2152 = vunpack.c.l.b16 %v2005
          %v2153 = vunpack.c.l.b16 %v2006
          %v2154 = vunpack.c.l.b16 %v2007
          %v2155 = vunpack.c.l.b16 %v2008
          %v2156 = vunpack.c.l.b16 %v2009
          %v2157 = vpack.c.b16 %v2150, %v2149
          %v2158 = vpack.c.b16 %v2152, %v2151
          %v2159 = vpack.c.b16 %v2154, %v2153
          %v2160 = vpack.c.b16 %v2156, %v2155
          %v2163 = vunpack.c.l.b16 %v2010
          %v2164 = vunpack.c.l.b16 %v2011
          %v2165 = vpack.c.b16 %v2164, %v2163
          %vm2166 = vcmask 97280
          %v2168 = vsel %vm2166, %v2157, 0
          %v2171 = vsel %vm2166, %v2158, 0
          %v2174 = vsel %vm2166, %v2159, 0
          %v2177 = vsel %vm2166, %v2160, 0
          %vm2179 = vcmask 1045504
          %v2181 = vsel %vm2179, %v2165, 0
          %2183 = vmatprep.subr.bf16.mxu0 0
          %2184 = vmatpush1.bf16.msra.mxu0 %v2181
          %2185 = vmatprep.subr.bf16.mxu0 0
          %2186 = vmatpush1.bf16.msra.mxu0 0
          %2187 = vmatprep.subr.bf16.mxu0 0
          %2188 = vmatpush1.bf16.msra.mxu0 0
          %2189 = vmatprep.subr.bf16.mxu0 0
          %2190 = vmatpush1.bf16.msra.mxu0 0
          %2191 = vmatprep.subr.bf16.mxu0 0
          %2192 = vmatpush1.bf16.msra.mxu0 0
          %2193 = vmatprep.subr.bf16.mxu0 0
          %2194 = vmatpush1.bf16.msra.mxu0 0
          %2195 = vmatprep.subr.bf16.mxu0 0
          %2196 = vmatpush1.bf16.msra.mxu0 0
          %2197 = vmatprep.subr.bf16.mxu0 0
          %2198 = vmatpush1.bf16.msra.mxu0 0
          %2199 = vmatprep.subr.bf16.mxu0 0
          %2200 = vmatpush1.bf16.msra.mxu0 0
          %2201 = vmatprep.subr.bf16.mxu0 0
          %2202 = vmatpush1.bf16.msra.mxu0 0
          %2203 = vmatprep.subr.bf16.mxu0 0
          %2204 = vmatpush1.bf16.msra.mxu0 0
          %2205 = vmatprep.subr.bf16.mxu0 0
          %2206 = vmatpush1.bf16.msra.mxu0 0
          %2207 = vmatprep.subr.bf16.mxu0 0
          %2208 = vmatpush1.bf16.msra.mxu0 0
          %2209 = vmatprep.subr.bf16.mxu0 0
          %2210 = vmatpush1.bf16.msra.mxu0 0
          %2211 = vmatprep.subr.bf16.mxu0 0
          %2212 = vmatpush1.bf16.msra.mxu0 0
          %2213 = vmatprep.subr.bf16.mxu0 0
          %2214 = vmatpush1.bf16.msra.mxu0 0
          %2215 = vmatprep.mubr.bf16.mxu0 0
          %2216 = vmatmul.mubr.bf16.gmra.mrb[0].mxu0 %v2168
          %v2217 = vpop.f32.mrb[0].mxu0
          %v2218 = vadd.f32 %v2111, %v2217
          %v2219 = vpop.f32.mrb[0].mxu0
          %v2220 = vpop.f32.mrb[0].mxu0
          %v2221 = vadd.f32 %v2114, %v2220
          %v2222 = vpop.f32.mrb[0].mxu0
          %2223 = vmatprep.mubr.bf16.mxu0 0
          %2224 = vmatmul.mubr.bf16.gmra.mrb[0].mxu0 %v2171
          %v2225 = vpop.f32.mrb[0].mxu0
          %v2226 = vadd.f32 %v2119, %v2225
          %v2227 = vpop.f32.mrb[0].mxu0
          %v2228 = vpop.f32.mrb[0].mxu0
          %v2229 = vadd.f32 %v2122, %v2228
          %v2230 = vpop.f32.mrb[0].mxu0
          %2231 = vmatprep.mubr.bf16.mxu0 0
          %2232 = vmatmul.mubr.bf16.gmra.mrb[0].mxu0 %v2174
          %v2233 = vpop.f32.mrb[0].mxu0
          %v2234 = vadd.f32 %v2127, %v2233
          %v2235 = vpop.f32.mrb[0].mxu0
          %v2236 = vpop.f32.mrb[0].mxu0
          %v2237 = vadd.f32 %v2130, %v2236
          %v2238 = vpop.f32.mrb[0].mxu0
          %2239 = vmatprep.mubr.bf16.mxu0 0
          %2240 = vmatmul.mubr.bf16.gmra.mrb[0].mxu0 %v2177
          %v2241 = vpop.f32.mrb[0].mxu0
          %v2242 = vadd.f32 %v2135, %v2241
          %v2243 = vpop.f32.mrb[0].mxu0
          %v2244 = vpop.f32.mrb[0].mxu0
          %v2245 = vadd.f32 %v2138, %v2244
          %v2246 = vpop.f32.mrb[0].mxu0
          %2247 = vdwg.mxu0
          %v2248 = vld [vmem:[%s10] sm:$0x1]
          %v2250 = vlaneseq
          %v2251 = vshrl.u32 %v2250, 7
          %v2252 = vsub.s32 0, %v2251
          %v2253 = vrot.slane %v2248, %v2252
          %v2255 = vadd.f32 %v2218, %v2253
          %v2256 = vadd.f32 %v2221, %v2253
          %v2257 = vadd.f32 %v2226, %v2253
          %v2258 = vadd.f32 %v2229, %v2253
          %v2259 = vadd.f32 %v2234, %v2253
          %v2260 = vadd.f32 %v2237, %v2253
          %v2261 = vadd.f32 %v2242, %v2253
          %v2262 = vadd.f32 %v2245, %v2253
          %v2263 = vmax.f32 %v2255, 0.0
          %v2264 = vmax.f32 %v2256, 0.0
          %v2265 = vmax.f32 %v2257, 0.0
          %v2266 = vmax.f32 %v2258, 0.0
          %v2267 = vmax.f32 %v2259, 0.0
          %v2268 = vmax.f32 %v2260, 0.0
          %v2269 = vmax.f32 %v2261, 0.0
          %v2270 = vmax.f32 %v2262, 0.0
          %v2271 = vpack.c.bf16 %v2264, %v2263
          %v2272 = vpack.c.bf16 %v2266, %v2265
          %v2273 = vpack.c.bf16 %v2268, %v2267
          %v2274 = vpack.c.bf16 %v2270, %v2269
          %v2275 = vld [vmem:[%s11] sm:$0xf]
          %v2276 = vld [vmem:[%s11 + $0x4] sm:$0xf]
          %v2277 = vld [vmem:[%s11 + $0x8] sm:$0xf]
          %v2278 = vld [vmem:[%s11 + $0xc] sm:$0xf]
          %v2279 = vld [vmem:[%s11 + $0x10] sm:$0xf]
          %v2280 = vld [vmem:[%s11 + $0x14] sm:$0xf]
          %v2281 = vld [vmem:[%s11 + $0x18] sm:$0xf]
          %v2282 = vld [vmem:[%s11 + $0x1c] sm:$0xf]
          %v2283 = vld [vmem:[%s11 + $0x20] sm:$0xf]
          %v2284 = vld [vmem:[%s11 + $0x24] sm:$0xf]
          %v2285 = vld [vmem:[%s11 + $0x28] sm:$0xf]
          %v2286 = vld [vmem:[%s11 + $0x2c] sm:$0xf]
          %v2287 = vld [vmem:[%s11 + $0x30] sm:$0xf]
          %v2288 = vld [vmem:[%s11 + $0x34] sm:$0xf]
          %v2289 = vld [vmem:[%s11 + $0x38] sm:$0xf]
          %v2290 = vld [vmem:[%s11 + $0x3c] sm:$0xf]
          %v2291 = vld [vmem:[%s12] sm:$0x1]
          %v2293 = vlaneseq
          %v2294 = vshrl.u32 %v2293, 7
          %v2295 = vsub.s32 0, %v2294
          %v2296 = vrot.slane %v2291, %v2295
          %v2314 = vunpack.c.l.b16 %v2275
          %v2315 = vunpack.c.l.b16 %v2276
          %v2316 = vunpack.c.l.b16 %v2277
          %v2317 = vunpack.c.l.b16 %v2278
          %v2318 = vunpack.c.l.b16 %v2279
          %v2319 = vunpack.c.l.b16 %v2280
          %v2320 = vunpack.c.l.b16 %v2281
          %v2321 = vunpack.c.l.b16 %v2282
          %v2322 = vunpack.c.l.b16 %v2283
          %v2323 = vunpack.c.l.b16 %v2284
          %v2324 = vunpack.c.l.b16 %v2285
          %v2325 = vunpack.c.l.b16 %v2286
          %v2326 = vunpack.c.l.b16 %v2287
          %v2327 = vunpack.c.l.b16 %v2288
          %v2328 = vunpack.c.l.b16 %v2289
          %v2329 = vunpack.c.l.b16 %v2290
          %v2330 = vpack.c.b16 %v2315, %v2314
          %v2331 = vpack.c.b16 %v2317, %v2316
          %v2332 = vpack.c.b16 %v2319, %v2318
          %v2333 = vpack.c.b16 %v2321, %v2320
          %v2334 = vpack.c.b16 %v2323, %v2322
          %v2335 = vpack.c.b16 %v2325, %v2324
          %v2336 = vpack.c.b16 %v2327, %v2326
          %v2337 = vpack.c.b16 %v2329, %v2328
          %2346 = vmatprep.subr.bf16.mxu0 0
          %2347 = vmatpush1.bf16.msra.mxu0 %v2330
          %2348 = vmatprep.subr.bf16.mxu0 0
          %2349 = vmatpush1.bf16.msra.mxu0 %v2331
          %2350 = vmatprep.subr.bf16.mxu0 0
          %2351 = vmatpush1.bf16.msra.mxu0 %v2332
          %2352 = vmatprep.subr.bf16.mxu0 0
          %2353 = vmatpush1.bf16.msra.mxu0 %v2333
          %2354 = vmatprep.subr.bf16.mxu0 0
          %2355 = vmatpush1.bf16.msra.mxu0 %v2334
          %2356 = vmatprep.subr.bf16.mxu0 0
          %2357 = vmatpush1.bf16.msra.mxu0 %v2335
          %2358 = vmatprep.subr.bf16.mxu0 0
          %2359 = vmatpush1.bf16.msra.mxu0 %v2336
          %2360 = vmatprep.subr.bf16.mxu0 0
          %2361 = vmatpush1.bf16.msra.mxu0 %v2337
          %2362 = vmatprep.subr.bf16.mxu0 0
          %2363 = vmatpush1.bf16.msra.mxu0 0
          %2364 = vmatprep.subr.bf16.mxu0 0
          %2365 = vmatpush1.bf16.msra.mxu0 0
          %2366 = vmatprep.subr.bf16.mxu0 0
          %2367 = vmatpush1.bf16.msra.mxu0 0
          %2368 = vmatprep.subr.bf16.mxu0 0
          %2369 = vmatpush1.bf16.msra.mxu0 0
          %2370 = vmatprep.subr.bf16.mxu0 0
          %2371 = vmatpush1.bf16.msra.mxu0 0
          %2372 = vmatprep.subr.bf16.mxu0 0
          %2373 = vmatpush1.bf16.msra.mxu0 0
          %2374 = vmatprep.subr.bf16.mxu0 0
          %2375 = vmatpush1.bf16.msra.mxu0 0
          %2376 = vmatprep.subr.bf16.mxu0 0
          %2377 = vmatpush1.bf16.msra.mxu0 0
          %2378 = vmatprep.mubr.bf16.mxu0 0
          %2379 = vmatmul.mubr.bf16.gmra.mrb[0].mxu0 %v2271
          %v2380 = vpop.f32.mrb[0].mxu0
          %v2381 = vadd.f32 %v2296, %v2380
          %v2382 = vpop.f32.mrb[0].mxu0
          %v2383 = vpop.f32.mrb[0].mxu0
          %v2384 = vadd.f32 %v2296, %v2383
          %v2385 = vpop.f32.mrb[0].mxu0
          %2386 = vmatprep.mubr.bf16.mxu0 0
          %2387 = vmatmul.mubr.bf16.gmra.mrb[0].mxu0 %v2272
          %v2388 = vpop.f32.mrb[0].mxu0
          %v2389 = vadd.f32 %v2296, %v2388
          %v2390 = vpop.f32.mrb[0].mxu0
          %v2391 = vpop.f32.mrb[0].mxu0
          %v2392 = vadd.f32 %v2296, %v2391
          %v2393 = vpop.f32.mrb[0].mxu0
          %2394 = vmatprep.mubr.bf16.mxu0 0
          %2395 = vmatmul.mubr.bf16.gmra.mrb[0].mxu0 %v2273
          %v2396 = vpop.f32.mrb[0].mxu0
          %v2397 = vadd.f32 %v2296, %v2396
          %v2398 = vpop.f32.mrb[0].mxu0
          %v2399 = vpop.f32.mrb[0].mxu0
          %v2400 = vadd.f32 %v2296, %v2399
          %v2401 = vpop.f32.mrb[0].mxu0
          %2402 = vmatprep.mubr.bf16.mxu0 0
          %2403 = vmatmul.mubr.bf16.gmra.mrb[0].mxu0 %v2274
          %v2404 = vpop.f32.mrb[0].mxu0
          %v2405 = vadd.f32 %v2296, %v2404
          %v2406 = vpop.f32.mrb[0].mxu0
          %v2407 = vpop.f32.mrb[0].mxu0
          %v2408 = vadd.f32 %v2296, %v2407
          %v2409 = vpop.f32.mrb[0].mxu0
          %2410 = vdwg.mxu0
          %v2411 = vmax.f32 %v2381, 0.0
          %v2412 = vmax.f32 %v2384, 0.0
          %v2413 = vmax.f32 %v2389, 0.0
          %v2414 = vmax.f32 %v2392, 0.0
          %v2415 = vmax.f32 %v2397, 0.0
          %v2416 = vmax.f32 %v2400, 0.0
          %v2417 = vmax.f32 %v2405, 0.0
          %v2418 = vmax.f32 %v2408, 0.0
          %2419 = vst [vmem:[#allocation3] sm:$0xff] %v2411
          %2420 = vst [vmem:[#allocation3 + $0x8] sm:$0xff] %v2412
          %2421 = vst [vmem:[#allocation3 + $0x10] sm:$0xff] %v2413
          %2422 = vst [vmem:[#allocation3 + $0x18] sm:$0xff] %v2414
          %2423 = vst [vmem:[#allocation3 + $0x20] sm:$0xff] %v2415
          %2424 = vst [vmem:[#allocation3 + $0x28] sm:$0xff] %v2416
          %2425 = vst [vmem:[#allocation3 + $0x30] sm:$0xff] %v2417
          %2426 = vst [vmem:[#allocation3 + $0x38] sm:$0xff] %v2418
        $region80: #{tpu_custom_call.1} parent=71 // pred_fallthru
          _
        // Predicated region
        $region81: #{tpu_custom_call.1} parent=71 // pred_check
          %p2427 = pneg %p321
        $region82: #{tpu_custom_call.1} parent=71 // pred_check_branch
          %2429 = sbr.rel (%p2427) target = $region84
        $region83: #{tpu_custom_call.1} parent=71 // pred_region
          %s2431 = ssub.s32 1024, 1024
          %2432 = vsyncadd [#allocation4], %s2431
          %s2433 = sshll.u32 [#allocation3], 4
          %s2434 = int_to_ptr.vmem [resolvable:$true] %s2433
          %2439 = dma.vmem_to_hbm [thread:$0]  %s2434, 1024, %s13, [#allocation4], 128, 128, 8
        $region84: #{tpu_custom_call.1} parent=71 // pred_fallthru
          _
        // Predicated region
        $region85: #{tpu_custom_call.1} parent=71 // pred_check
          %p2440 = pneg %p321
        $region86: #{tpu_custom_call.1} parent=71 // pred_check_branch
          %2442 = sbr.rel (%p2440) target = $region88
        $region87: #{tpu_custom_call.1} parent=71 // pred_region
          %2443 = dma.done [#allocation4], 1024
        $region88: #{tpu_custom_call.1} parent=71 // pred_fallthru
          _
      $region72: #{tpu_custom_call.1} parent=5 // pred_fallthru
        _
      %p2444 = scmp.le.s32.totalorder 2, %s20
      // Predicated region
      $region89: #{tpu_custom_call.1} parent=5 // pred_check
        %p2445 = pneg %p2444
      $region90: #{tpu_custom_call.1} parent=5 // pred_check_branch
        %2447 = sbr.rel (%p2445) target = $region92
      $region91: #{tpu_custom_call.1} parent=5 // pred_region
        %s2448 = ssub.s32 %s20, 2
      $region92: #{tpu_custom_call.1} parent=5 // pred_fallthru
        _
    $region6: #{tpu_custom_call.1} parent=1 // loop_footer
      %s24 = sadd.s32 1, %s20
    $region7: #{tpu_custom_call.1} parent=1 // loop_footer_branch
      %19 = sbr.rel target = $region3
    $region8: #{tpu_custom_call.1} parent=1 // loop_exit
      _
    %2449 = vsyncpa [#allocation4], 1
    %s2450 = scalar_lea.sflag [#allocation4], 1
    %2451 = vsyncpa %s2450, 1

</llo_original>
